<compile_context>
chip_gen: v7x
topology: tpu7x:2x2x1
jax: 0.10.0
libtpu: 0.0.40
codegen_flags: <defaults>
</compile_context>

<pallas_src>
import jax
import jax.numpy as jnp
from jax.experimental import pallas as pl
from jax.experimental.pallas import tpu as pltpu


N_FEATURES_DEFAULT = 4
HIDDEN_DIMS = (200, 100, 50, 3, 50, 100, 200)  # in-200-100-50-3-50-100-200-out


def _round_up(v, m):
    return ((v + m - 1) // m) * m


def ae_3d_200_kernel(
    x_ref,
    w1, b1, w2, b2, w3, b3, w4, b4,   # encoder
    w5, b5, w6, b6, w7, b7, w8, b8,   # decoder
    o_ref,
):
    """One batch tile through all 8 layers; weights are VMEM-resident."""

    def dense(h, w_ref, b_ref):
        # bf16 MXU operands, f32 accumulate; bias add stays f32.
        return jnp.dot(h.astype(jnp.bfloat16), w_ref[...],
                       preferred_element_type=jnp.float32) + b_ref[...]

    h = x_ref[...].astype(jnp.float32)

    # ----- encode -----
    h = jnp.tanh(dense(h, w1, b1))
    h = jnp.tanh(dense(h, w2, b2))
    h = jnp.tanh(dense(h, w3, b3))
    z = dense(h, w4, b4)

    # ----- decode (decode() applies tanh to z first; last layer is linear) --
    # tanh kept in f32 for portability/accuracy (v5e EUP has no bf16).  On
    # v6e/v7x a bf16 tanh would roughly halve EUP cycles if accuracy allows.
    h = jnp.tanh(z)
    h = jnp.tanh(dense(h, w5, b5))
    h = jnp.tanh(dense(h, w6, b6))
    h = jnp.tanh(dense(h, w7, b7))
    out = dense(h, w8, b8)

    o_ref[...] = out.astype(o_ref.dtype)


def _pad_and_cast_params(params):
    """Zero-pad hidden dims to lane multiples of 128 and cast W to bf16."""
    flat = []
    n_layers = len(params)
    for i, (w, b) in enumerate(params):
        d_in, d_out = w.shape
        in_p = d_in if i == 0 else _round_up(d_in, 128)
        out_p = d_out if i == n_layers - 1 else _round_up(d_out, 128)
        w_p = jnp.zeros((in_p, out_p), jnp.bfloat16)
        w_p = w_p.at[:d_in, :d_out].set(w.astype(jnp.bfloat16))
        b_p = jnp.zeros((1, out_p), jnp.float32)
        b_p = b_p.at[:, :d_out].set(b.reshape(1, d_out).astype(jnp.float32))
        flat.extend([w_p, b_p])
    return flat


def ae_3d_200_forward(x, params, *, block_rows=512):
    """x: (B, n_features); params: 8 x (W stored as (in, out) f32, b (1, out))."""
    B, n_features = x.shape
    flat = _pad_and_cast_params(params)

    # Batch tile: >=256 rows fills MXU rows and amortizes per-step overhead at
    # real batch sizes; clamp to the (8-rounded) batch for tiny inputs.
    tb = min(block_rows, _round_up(B, 8))
    b_pad = _round_up(B, tb)
    if b_pad != B:
        x = jnp.pad(x, ((0, b_pad - B), (0, 0)))
    grid = (b_pad // tb,)

    row_spec = pl.BlockSpec((tb, n_features), lambda i: (i, 0))
    # Constant index maps -> each weight/bias DMA'd once, stays resident.
    param_specs = [pl.BlockSpec(p.shape, lambda i: (0, 0)) for p in flat]

    layer_dims = [n_features] + list(HIDDEN_DIMS) + [n_features]
    macs = sum(layer_dims[i] * layer_dims[i + 1] for i in range(8))
    weight_bytes = sum(int(p.size) * p.dtype.itemsize for p in flat)
    cost = pl.CostEstimate(
        flops=2 * b_pad * macs,
        transcendentals=b_pad * sum(HIDDEN_DIMS),
        bytes_accessed=2 * b_pad * n_features * x.dtype.itemsize + weight_bytes,
    )

    out = pl.pallas_call(
        ae_3d_200_kernel,
        out_shape=jax.ShapeDtypeStruct((b_pad, n_features), x.dtype),
        grid=grid,
        in_specs=[row_spec] + param_specs,
        out_specs=row_spec,
        compiler_params=pltpu.CompilerParams(
            dimension_semantics=("parallel",),  # megacore shard on v7x
        ),
        cost_estimate=cost,
    )(x, *flat)
    return out[:B]


def init_params(key, n_features=N_FEATURES_DEFAULT):
    """PyTorch nn.Linear-style init (U[-1/sqrt(in), 1/sqrt(in)]), W as (in, out)."""
    dims = [n_features] + list(HIDDEN_DIMS) + [n_features]
    params = []
    for i in range(8):
        d_in, d_out = dims[i], dims[i + 1]
        key, kw, kb = jax.random.split(key, 3)
        bound = 1.0 / jnp.sqrt(jnp.float32(d_in))
        w = jax.random.uniform(kw, (d_in, d_out), jnp.float32, -bound, bound)
        b = jax.random.uniform(kb, (1, d_out), jnp.float32, -bound, bound)
        params.append((w, b))
    return params


def ae_3d_200_reference(x, params):
    """Pure-JAX f32 reference for correctness checking."""
    h = x
    for i in range(3):
        w, b = params[i]
        h = jnp.tanh(h @ w + b)
    w, b = params[3]
    z = h @ w + b
    h = jnp.tanh(z)
    for i in range(4, 7):
        w, b = params[i]
        h = jnp.tanh(h @ w + b)
    w, b = params[7]
    return h @ w + b


if __name__ == "__main__":
    key = jax.random.PRNGKey(0)
    k_params, k_x = jax.random.split(key)

    n_features = 4
    batch = 16
    params = init_params(k_params, n_features)
    x = jax.random.normal(k_x, (batch, n_features), jnp.float32)

    # Small block_rows so the tiny test batch still exercises a multi-step grid
    # (production default is block_rows=512).
    out = ae_3d_200_forward(x, params, block_rows=8)
    out = jax.block_until_ready(out)

    ref = ae_3d_200_reference(x, params)
    assert out.shape == (batch, n_features)
    # bf16 MXU operands -> tolerance loosened vs the pure-f32 path.
    max_err = float(jnp.max(jnp.abs(out - ref)))
    assert jnp.allclose(out, ref, atol=2e-2, rtol=2e-2), (
        f"mismatch vs reference: max abs err {max_err}")

    print("KERNEL_OK")
</pallas_src>

<mosaic_0001>
module attributes {stable_mosaic.version = 11 : i64} {
  func.func @ae_3d_200_kernel(%arg0: i32, %arg1: memref<8x4xf32, #tpu.memory_space<vmem>>, %arg2: memref<4x256xbf16, #tpu.memory_space<vmem>>, %arg3: memref<1x256xf32, #tpu.memory_space<vmem>>, %arg4: memref<256x128xbf16, #tpu.memory_space<vmem>>, %arg5: memref<1x128xf32, #tpu.memory_space<vmem>>, %arg6: memref<128x128xbf16, #tpu.memory_space<vmem>>, %arg7: memref<1x128xf32, #tpu.memory_space<vmem>>, %arg8: memref<128x128xbf16, #tpu.memory_space<vmem>>, %arg9: memref<1x128xf32, #tpu.memory_space<vmem>>, %arg10: memref<128x128xbf16, #tpu.memory_space<vmem>>, %arg11: memref<1x128xf32, #tpu.memory_space<vmem>>, %arg12: memref<128x128xbf16, #tpu.memory_space<vmem>>, %arg13: memref<1x128xf32, #tpu.memory_space<vmem>>, %arg14: memref<128x256xbf16, #tpu.memory_space<vmem>>, %arg15: memref<1x256xf32, #tpu.memory_space<vmem>>, %arg16: memref<256x4xbf16, #tpu.memory_space<vmem>>, %arg17: memref<1x4xf32, #tpu.memory_space<vmem>>, %arg18: memref<8x4xf32, #tpu.memory_space<vmem>>) attributes {dimension_semantics = [#tpu.dimension_semantics<parallel>], iteration_bounds = array<i64: 2>, scalar_prefetch = 0 : i64, scratch_operands = 0 : i64, tpu.core_type = #tpu.core_type<tc>, window_params = [{transform_indices = @transform_0, window_bounds = array<i64: 8, 4>}, {pipeline_mode = #tpu.pipeline_mode<synchronous>, transform_indices = @transform_1, window_bounds = array<i64: 4, 256>}, {pipeline_mode = #tpu.pipeline_mode<synchronous>, transform_indices = @transform_2, window_bounds = array<i64: 1, 256>}, {pipeline_mode = #tpu.pipeline_mode<synchronous>, transform_indices = @transform_3, window_bounds = array<i64: 256, 128>}, {pipeline_mode = #tpu.pipeline_mode<synchronous>, transform_indices = @transform_4, window_bounds = array<i64: 1, 128>}, {pipeline_mode = #tpu.pipeline_mode<synchronous>, transform_indices = @transform_5, window_bounds = array<i64: 128, 128>}, {pipeline_mode = #tpu.pipeline_mode<synchronous>, transform_indices = @transform_6, window_bounds = array<i64: 1, 128>}, {pipeline_mode = #tpu.pipeline_mode<synchronous>, transform_indices = @transform_7, window_bounds = array<i64: 128, 128>}, {pipeline_mode = #tpu.pipeline_mode<synchronous>, transform_indices = @transform_8, window_bounds = array<i64: 1, 128>}, {pipeline_mode = #tpu.pipeline_mode<synchronous>, transform_indices = @transform_9, window_bounds = array<i64: 128, 128>}, {pipeline_mode = #tpu.pipeline_mode<synchronous>, transform_indices = @transform_10, window_bounds = array<i64: 1, 128>}, {pipeline_mode = #tpu.pipeline_mode<synchronous>, transform_indices = @transform_11, window_bounds = array<i64: 128, 128>}, {pipeline_mode = #tpu.pipeline_mode<synchronous>, transform_indices = @transform_12, window_bounds = array<i64: 1, 128>}, {pipeline_mode = #tpu.pipeline_mode<synchronous>, transform_indices = @transform_13, window_bounds = array<i64: 128, 256>}, {pipeline_mode = #tpu.pipeline_mode<synchronous>, transform_indices = @transform_14, window_bounds = array<i64: 1, 256>}, {pipeline_mode = #tpu.pipeline_mode<synchronous>, transform_indices = @transform_15, window_bounds = array<i64: 256, 4>}, {pipeline_mode = #tpu.pipeline_mode<synchronous>, transform_indices = @transform_16, window_bounds = array<i64: 1, 4>}, {transform_indices = @transform_17, window_bounds = array<i64: 8, 4>}]} {
    %c0 = arith.constant 0 : index
    %c0_0 = arith.constant 0 : index
    %0 = vector.load %arg1[%c0, %c0_0] : memref<8x4xf32, #tpu.memory_space<vmem>>, vector<8x4xf32>
    %1 = arith.truncf %0 : vector<8x4xf32> to vector<8x4xbf16>
    %c0_1 = arith.constant 0 : index
    %c0_2 = arith.constant 0 : index
    %2 = vector.load %arg2[%c0_1, %c0_2] : memref<4x256xbf16, #tpu.memory_space<vmem>>, vector<4x256xbf16>
    %cst = arith.constant dense<0.000000e+00> : vector<8x256xf32>
    %3 = tpu.matmul %1, %2, %cst {dimension_numbers = #tpu.dot_dimension_numbers<[1], [0], [0], [1], [0, 0, 1, 1], [], []>} : vector<8x4xbf16>, vector<4x256xbf16>, vector<8x256xf32> -> vector<8x256xf32>
    %c0_3 = arith.constant 0 : index
    %c0_4 = arith.constant 0 : index
    %4 = vector.load %arg3[%c0_3, %c0_4] : memref<1x256xf32, #tpu.memory_space<vmem>>, vector<1x256xf32>
    %5 = vector.broadcast %4 : vector<1x256xf32> to vector<8x256xf32>
    %6 = arith.addf %3, %5 : vector<8x256xf32>
    %7 = math.tanh %6 : vector<8x256xf32>
    %8 = arith.truncf %7 : vector<8x256xf32> to vector<8x256xbf16>
    %c0_5 = arith.constant 0 : index
    %c0_6 = arith.constant 0 : index
    %9 = vector.load %arg4[%c0_5, %c0_6] : memref<256x128xbf16, #tpu.memory_space<vmem>>, vector<256x128xbf16>
    %cst_7 = arith.constant dense<0.000000e+00> : vector<8x128xf32>
    %10 = tpu.matmul %8, %9, %cst_7 {dimension_numbers = #tpu.dot_dimension_numbers<[1], [0], [0], [1], [0, 0, 1, 1], [], []>} : vector<8x256xbf16>, vector<256x128xbf16>, vector<8x128xf32> -> vector<8x128xf32>
    %c0_8 = arith.constant 0 : index
    %c0_9 = arith.constant 0 : index
    %11 = vector.load %arg5[%c0_8, %c0_9] : memref<1x128xf32, #tpu.memory_space<vmem>>, vector<1x128xf32>
    %12 = vector.broadcast %11 : vector<1x128xf32> to vector<8x128xf32>
    %13 = arith.addf %10, %12 : vector<8x128xf32>
    %14 = math.tanh %13 : vector<8x128xf32>
    %15 = arith.truncf %14 : vector<8x128xf32> to vector<8x128xbf16>
    %c0_10 = arith.constant 0 : index
    %c0_11 = arith.constant 0 : index
    %16 = vector.load %arg6[%c0_10, %c0_11] : memref<128x128xbf16, #tpu.memory_space<vmem>>, vector<128x128xbf16>
    %cst_12 = arith.constant dense<0.000000e+00> : vector<8x128xf32>
    %17 = tpu.matmul %15, %16, %cst_12 {dimension_numbers = #tpu.dot_dimension_numbers<[1], [0], [0], [1], [0, 0, 1, 1], [], []>} : vector<8x128xbf16>, vector<128x128xbf16>, vector<8x128xf32> -> vector<8x128xf32>
    %c0_13 = arith.constant 0 : index
    %c0_14 = arith.constant 0 : index
    %18 = vector.load %arg7[%c0_13, %c0_14] : memref<1x128xf32, #tpu.memory_space<vmem>>, vector<1x128xf32>
    %19 = vector.broadcast %18 : vector<1x128xf32> to vector<8x128xf32>
    %20 = arith.addf %17, %19 : vector<8x128xf32>
    %21 = math.tanh %20 : vector<8x128xf32>
    %22 = arith.truncf %21 : vector<8x128xf32> to vector<8x128xbf16>
    %c0_15 = arith.constant 0 : index
    %c0_16 = arith.constant 0 : index
    %23 = vector.load %arg8[%c0_15, %c0_16] : memref<128x128xbf16, #tpu.memory_space<vmem>>, vector<128x128xbf16>
    %cst_17 = arith.constant dense<0.000000e+00> : vector<8x128xf32>
    %24 = tpu.matmul %22, %23, %cst_17 {dimension_numbers = #tpu.dot_dimension_numbers<[1], [0], [0], [1], [0, 0, 1, 1], [], []>} : vector<8x128xbf16>, vector<128x128xbf16>, vector<8x128xf32> -> vector<8x128xf32>
    %c0_18 = arith.constant 0 : index
    %c0_19 = arith.constant 0 : index
    %25 = vector.load %arg9[%c0_18, %c0_19] : memref<1x128xf32, #tpu.memory_space<vmem>>, vector<1x128xf32>
    %26 = vector.broadcast %25 : vector<1x128xf32> to vector<8x128xf32>
    %27 = arith.addf %24, %26 : vector<8x128xf32>
    %28 = math.tanh %27 : vector<8x128xf32>
    %29 = arith.truncf %28 : vector<8x128xf32> to vector<8x128xbf16>
    %c0_20 = arith.constant 0 : index
    %c0_21 = arith.constant 0 : index
    %30 = vector.load %arg10[%c0_20, %c0_21] : memref<128x128xbf16, #tpu.memory_space<vmem>>, vector<128x128xbf16>
    %cst_22 = arith.constant dense<0.000000e+00> : vector<8x128xf32>
    %31 = tpu.matmul %29, %30, %cst_22 {dimension_numbers = #tpu.dot_dimension_numbers<[1], [0], [0], [1], [0, 0, 1, 1], [], []>} : vector<8x128xbf16>, vector<128x128xbf16>, vector<8x128xf32> -> vector<8x128xf32>
    %c0_23 = arith.constant 0 : index
    %c0_24 = arith.constant 0 : index
    %32 = vector.load %arg11[%c0_23, %c0_24] : memref<1x128xf32, #tpu.memory_space<vmem>>, vector<1x128xf32>
    %33 = vector.broadcast %32 : vector<1x128xf32> to vector<8x128xf32>
    %34 = arith.addf %31, %33 : vector<8x128xf32>
    %35 = math.tanh %34 : vector<8x128xf32>
    %36 = arith.truncf %35 : vector<8x128xf32> to vector<8x128xbf16>
    %c0_25 = arith.constant 0 : index
    %c0_26 = arith.constant 0 : index
    %37 = vector.load %arg12[%c0_25, %c0_26] : memref<128x128xbf16, #tpu.memory_space<vmem>>, vector<128x128xbf16>
    %cst_27 = arith.constant dense<0.000000e+00> : vector<8x128xf32>
    %38 = tpu.matmul %36, %37, %cst_27 {dimension_numbers = #tpu.dot_dimension_numbers<[1], [0], [0], [1], [0, 0, 1, 1], [], []>} : vector<8x128xbf16>, vector<128x128xbf16>, vector<8x128xf32> -> vector<8x128xf32>
    %c0_28 = arith.constant 0 : index
    %c0_29 = arith.constant 0 : index
    %39 = vector.load %arg13[%c0_28, %c0_29] : memref<1x128xf32, #tpu.memory_space<vmem>>, vector<1x128xf32>
    %40 = vector.broadcast %39 : vector<1x128xf32> to vector<8x128xf32>
    %41 = arith.addf %38, %40 : vector<8x128xf32>
    %42 = math.tanh %41 : vector<8x128xf32>
    %43 = arith.truncf %42 : vector<8x128xf32> to vector<8x128xbf16>
    %c0_30 = arith.constant 0 : index
    %c0_31 = arith.constant 0 : index
    %44 = vector.load %arg14[%c0_30, %c0_31] : memref<128x256xbf16, #tpu.memory_space<vmem>>, vector<128x256xbf16>
    %cst_32 = arith.constant dense<0.000000e+00> : vector<8x256xf32>
    %45 = tpu.matmul %43, %44, %cst_32 {dimension_numbers = #tpu.dot_dimension_numbers<[1], [0], [0], [1], [0, 0, 1, 1], [], []>} : vector<8x128xbf16>, vector<128x256xbf16>, vector<8x256xf32> -> vector<8x256xf32>
    %c0_33 = arith.constant 0 : index
    %c0_34 = arith.constant 0 : index
    %46 = vector.load %arg15[%c0_33, %c0_34] : memref<1x256xf32, #tpu.memory_space<vmem>>, vector<1x256xf32>
    %47 = vector.broadcast %46 : vector<1x256xf32> to vector<8x256xf32>
    %48 = arith.addf %45, %47 : vector<8x256xf32>
    %49 = math.tanh %48 : vector<8x256xf32>
    %50 = arith.truncf %49 : vector<8x256xf32> to vector<8x256xbf16>
    %c0_35 = arith.constant 0 : index
    %c0_36 = arith.constant 0 : index
    %51 = vector.load %arg16[%c0_35, %c0_36] : memref<256x4xbf16, #tpu.memory_space<vmem>>, vector<256x4xbf16>
    %cst_37 = arith.constant dense<0.000000e+00> : vector<8x4xf32>
    %52 = tpu.matmul %50, %51, %cst_37 {dimension_numbers = #tpu.dot_dimension_numbers<[1], [0], [0], [1], [0, 0, 1, 1], [], []>} : vector<8x256xbf16>, vector<256x4xbf16>, vector<8x4xf32> -> vector<8x4xf32>
    %c0_38 = arith.constant 0 : index
    %c0_39 = arith.constant 0 : index
    %53 = vector.load %arg17[%c0_38, %c0_39] : memref<1x4xf32, #tpu.memory_space<vmem>>, vector<1x4xf32>
    %54 = vector.broadcast %53 : vector<1x4xf32> to vector<8x4xf32>
    %55 = arith.addf %52, %54 : vector<8x4xf32>
    %c0_40 = arith.constant 0 : index
    %c0_41 = arith.constant 0 : index
    %56 = vector.load %arg18[%c0_40, %c0_41] : memref<8x4xf32, #tpu.memory_space<vmem>>, vector<8x4xf32>
    tpu.vector_store %arg18[%c0_40, %c0_41], %55 {strides = array<i32>} : memref<8x4xf32, #tpu.memory_space<vmem>>, vector<8x4xf32>,
    return
  }
  func.func @transform_0(%arg0: i32) -> (i32, i32) {
    %c0_i32 = arith.constant 0 : i32
    %c0_i32_0 = arith.constant 0 : i32
    return %arg0, %c0_i32 : i32, i32
  }
  func.func @transform_1(%arg0: i32) -> (i32, i32) {
    %c0_i32 = arith.constant 0 : i32
    %c0_i32_0 = arith.constant 0 : i32
    %c0_i32_1 = arith.constant 0 : i32
    return %c0_i32, %c0_i32_0 : i32, i32
  }
  func.func @transform_2(%arg0: i32) -> (i32, i32) {
    %c0_i32 = arith.constant 0 : i32
    %c0_i32_0 = arith.constant 0 : i32
    %c0_i32_1 = arith.constant 0 : i32
    return %c0_i32, %c0_i32_0 : i32, i32
  }
  func.func @transform_3(%arg0: i32) -> (i32, i32) {
    %c0_i32 = arith.constant 0 : i32
    %c0_i32_0 = arith.constant 0 : i32
    %c0_i32_1 = arith.constant 0 : i32
    return %c0_i32, %c0_i32_0 : i32, i32
  }
  func.func @transform_4(%arg0: i32) -> (i32, i32) {
    %c0_i32 = arith.constant 0 : i32
    %c0_i32_0 = arith.constant 0 : i32
    %c0_i32_1 = arith.constant 0 : i32
    return %c0_i32, %c0_i32_0 : i32, i32
  }
  func.func @transform_5(%arg0: i32) -> (i32, i32) {
    %c0_i32 = arith.constant 0 : i32
    %c0_i32_0 = arith.constant 0 : i32
    %c0_i32_1 = arith.constant 0 : i32
    return %c0_i32, %c0_i32_0 : i32, i32
  }
  func.func @transform_6(%arg0: i32) -> (i32, i32) {
    %c0_i32 = arith.constant 0 : i32
    %c0_i32_0 = arith.constant 0 : i32
    %c0_i32_1 = arith.constant 0 : i32
    return %c0_i32, %c0_i32_0 : i32, i32
  }
  func.func @transform_7(%arg0: i32) -> (i32, i32) {
    %c0_i32 = arith.constant 0 : i32
    %c0_i32_0 = arith.constant 0 : i32
    %c0_i32_1 = arith.constant 0 : i32
    return %c0_i32, %c0_i32_0 : i32, i32
  }
  func.func @transform_8(%arg0: i32) -> (i32, i32) {
    %c0_i32 = arith.constant 0 : i32
    %c0_i32_0 = arith.constant 0 : i32
    %c0_i32_1 = arith.constant 0 : i32
    return %c0_i32, %c0_i32_0 : i32, i32
  }
  func.func @transform_9(%arg0: i32) -> (i32, i32) {
    %c0_i32 = arith.constant 0 : i32
    %c0_i32_0 = arith.constant 0 : i32
    %c0_i32_1 = arith.constant 0 : i32
    return %c0_i32, %c0_i32_0 : i32, i32
  }
  func.func @transform_10(%arg0: i32) -> (i32, i32) {
    %c0_i32 = arith.constant 0 : i32
    %c0_i32_0 = arith.constant 0 : i32
    %c0_i32_1 = arith.constant 0 : i32
    return %c0_i32, %c0_i32_0 : i32, i32
  }
  func.func @transform_11(%arg0: i32) -> (i32, i32) {
    %c0_i32 = arith.constant 0 : i32
    %c0_i32_0 = arith.constant 0 : i32
    %c0_i32_1 = arith.constant 0 : i32
    return %c0_i32, %c0_i32_0 : i32, i32
  }
  func.func @transform_12(%arg0: i32) -> (i32, i32) {
    %c0_i32 = arith.constant 0 : i32
    %c0_i32_0 = arith.constant 0 : i32
    %c0_i32_1 = arith.constant 0 : i32
    return %c0_i32, %c0_i32_0 : i32, i32
  }
  func.func @transform_13(%arg0: i32) -> (i32, i32) {
    %c0_i32 = arith.constant 0 : i32
    %c0_i32_0 = arith.constant 0 : i32
    %c0_i32_1 = arith.constant 0 : i32
    return %c0_i32, %c0_i32_0 : i32, i32
  }
  func.func @transform_14(%arg0: i32) -> (i32, i32) {
    %c0_i32 = arith.constant 0 : i32
    %c0_i32_0 = arith.constant 0 : i32
    %c0_i32_1 = arith.constant 0 : i32
    return %c0_i32, %c0_i32_0 : i32, i32
  }
  func.func @transform_15(%arg0: i32) -> (i32, i32) {
    %c0_i32 = arith.constant 0 : i32
    %c0_i32_0 = arith.constant 0 : i32
    %c0_i32_1 = arith.constant 0 : i32
    return %c0_i32, %c0_i32_0 : i32, i32
  }
  func.func @transform_16(%arg0: i32) -> (i32, i32) {
    %c0_i32 = arith.constant 0 : i32
    %c0_i32_0 = arith.constant 0 : i32
    %c0_i32_1 = arith.constant 0 : i32
    return %c0_i32, %c0_i32_0 : i32, i32
  }
  func.func @transform_17(%arg0: i32) -> (i32, i32) {
    %c0_i32 = arith.constant 0 : i32
    %c0_i32_0 = arith.constant 0 : i32
    return %arg0, %c0_i32 : i32, i32
  }
}

</mosaic_0001>

<llo_original>
// kernel: tpu_custom_call.1
$region0: #{tpu_custom_call.1}
  #allocation0 [shape = 'u32[]', space=smem, size = 0x4, offset = 0x4, fixed_abs, tag = 'smem constant byte address 0x4 - core index']
  #allocation1 [shape = 'u32[144,128]{1,0:T(1,128)}', space=vmem, size = 0x12000, scoped, tag = 'internal scratch']
  %s0 = inlined_call_operand.vmem [shape: f32[16,4], index: 0, kind: input, shape index: {}]
  %s1 = inlined_call_operand.hbm [shape: bf16[4,256], index: 1, kind: input, shape index: {}]
  %s2 = inlined_call_operand.hbm [shape: f32[1,256], index: 2, kind: input, shape index: {}]
  %s3 = inlined_call_operand.vmem [shape: bf16[256,128], index: 3, kind: input, shape index: {}]
  %s4 = inlined_call_operand.vmem [shape: f32[1,128], index: 4, kind: input, shape index: {}]
  %s5 = inlined_call_operand.hbm [shape: bf16[128,128], index: 5, kind: input, shape index: {}]
  %s6 = inlined_call_operand.hbm [shape: f32[1,128], index: 6, kind: input, shape index: {}]
  %s7 = inlined_call_operand.hbm [shape: bf16[128,128], index: 7, kind: input, shape index: {}]
  %s8 = inlined_call_operand.hbm [shape: f32[1,128], index: 8, kind: input, shape index: {}]
  %s9 = inlined_call_operand.hbm [shape: bf16[128,128], index: 9, kind: input, shape index: {}]
  %s10 = inlined_call_operand.hbm [shape: f32[1,128], index: 10, kind: input, shape index: {}]
  %s11 = inlined_call_operand.vmem [shape: bf16[128,128], index: 11, kind: input, shape index: {}]
  %s12 = inlined_call_operand.hbm [shape: f32[1,128], index: 12, kind: input, shape index: {}]
  %s13 = inlined_call_operand.hbm [shape: bf16[128,256], index: 13, kind: input, shape index: {}]
  %s14 = inlined_call_operand.vmem [shape: f32[1,256], index: 14, kind: input, shape index: {}]
  %s15 = inlined_call_operand.vmem [shape: bf16[256,4], index: 15, kind: input, shape index: {}]
  %s16 = inlined_call_operand.vmem [shape: f32[1,4], index: 16, kind: input, shape index: {}]
  %s17 = inlined_call_operand.vmem [shape: f32[16,4], index: 17, kind: output, shape index: {}]
  %s18 = sld [smem:[#allocation0]]
  $region141: #{tpu_custom_call.1} parent=0
    _
  %s20 = ssub.s32 1, %s18
  %s21 = scalar_select 0, %s20, %s18
  $region1: #{tpu_custom_call.1} parent=0
    #allocation2 [shape = 'u8[2048]{0}', space=vmem, size = 0x800, scoped, tag = 'input window, operand 1, single buffered']
    #allocation3 [shape = 's32[2]{0}', space=sflag, size = 0x8, scoped, tag = 'scoped memory for tpu_custom_call.1']
    #allocation4 [shape = 'u8[1024]{0}', space=vmem, size = 0x400, scoped, tag = 'input window, operand 2, single buffered']
    #allocation5 [shape = 's32[1]{0}', space=sflag, size = 0x4, scoped, tag = 'scoped memory for tpu_custom_call.1']
    #allocation6 [shape = 'u8[32768]{0}', space=vmem, size = 0x8000, scoped, tag = 'input window, operand 5, single buffered']
    #allocation7 [shape = 'u8[512]{0}', space=vmem, size = 0x400, scoped, tag = 'input window, operand 6, single buffered']
    #allocation8 [shape = 's32[1]{0}', space=sflag, size = 0x4, scoped, tag = 'scoped memory for tpu_custom_call.1']
    #allocation9 [shape = 'u8[32768]{0}', space=vmem, size = 0x8000, scoped, tag = 'input window, operand 7, single buffered']
    #allocation10 [shape = 'u8[512]{0}', space=vmem, size = 0x400, scoped, tag = 'input window, operand 8, single buffered']
    #allocation11 [shape = 's32[1]{0}', space=sflag, size = 0x4, scoped, tag = 'scoped memory for tpu_custom_call.1']
    #allocation12 [shape = 'u8[32768]{0}', space=vmem, size = 0x8000, scoped, tag = 'input window, operand 9, single buffered']
    #allocation13 [shape = 'u8[512]{0}', space=vmem, size = 0x400, scoped, tag = 'input window, operand 10, single buffered']
    #allocation14 [shape = 's32[1]{0}', space=sflag, size = 0x4, scoped, tag = 'scoped memory for tpu_custom_call.1']
    #allocation15 [shape = 'u8[512]{0}', space=vmem, size = 0x400, scoped, tag = 'input window, operand 12, single buffered']
    #allocation16 [shape = 'u8[65536]{0}', space=vmem, size = 0x10000, scoped, tag = 'input window, operand 13, single buffered']
    #allocation17 [shape = 's32[1]{0}', space=sflag, size = 0x4, scoped, tag = 'scoped memory for tpu_custom_call.1']
    %22 = vsyncpa [#allocation3], 0
    %23 = vsyncpa [#allocation5], 0
    %24 = vsyncpa [#allocation8], 0
    %25 = vsyncpa [#allocation11], 0
    %26 = vsyncpa [#allocation14], 0
    %27 = vsyncpa [#allocation17], 0
    loop: start=0, step=1, limit=4
    $region2: #{tpu_custom_call.1} parent=1 // loop_pre_header
      _
    $region3: #{tpu_custom_call.1} parent=1 // loop_header
      %s29 = sphi 0, %s33
      %p30 = scmp.ge.s32.totalorder %s29, 4
      %s39 = sphi 0, %s41
      %s42 = sphi 0, %s39
      %s43 = sphi 0, %s42
      %s59 = sphi 0, %s43
      %s63 = sphi 0, %s63
      %s65 = sphi 0, %s63
      %s66 = sphi 0, %s65
      %s80 = sphi 0, %s66
      %s84 = sphi 0, %s84
      %s86 = sphi 0, %s84
      %s87 = sphi 0, %s86
      %s101 = sphi 0, %s87
      %s105 = sphi 0, %s105
      %s107 = sphi 0, %s105
      %s108 = sphi 0, %s107
      %s122 = sphi 0, %s108
      %s126 = sphi 0, %s126
      %s128 = sphi 0, %s126
      %s129 = sphi 0, %s128
      %s143 = sphi 0, %s129
      %s147 = sphi 0, %s147
      %s149 = sphi 0, %s147
      %s150 = sphi 0, %s149
      %s164 = sphi 0, %s150
      %s168 = sphi 0, %s168
      %s170 = sphi 0, %s168
      %s171 = sphi 0, %s170
      %s185 = sphi 0, %s171
      %s189 = sphi 0, %s189
      %s191 = sphi 0, %s189
      %s192 = sphi 0, %s191
      %s206 = sphi 0, %s192
      %s210 = sphi 0, %s210
      %s212 = sphi 0, %s210
      %s213 = sphi 0, %s212
      %s227 = sphi 0, %s213
      %s231 = sphi 0, %s231
      %s233 = sphi 0, %s231
      %s234 = sphi 0, %s233
      %s248 = sphi 0, %s234
      %s252 = sphi 0, %s252
      %s254 = sphi 0, %s252
      %s255 = sphi 0, %s254
      %s269 = sphi 0, %s255
      %s273 = sphi 0, %s273
      %s275 = sphi 0, %s273
      %s276 = sphi 0, %s275
      %s290 = sphi 0, %s276
      %s294 = sphi 0, %s294
      %s296 = sphi 0, %s294
      %s297 = sphi 0, %s296
      %s311 = sphi 0, %s297
      %s315 = sphi 0, %s315
      %s317 = sphi 0, %s315
      %s318 = sphi 0, %s317
      %s332 = sphi 0, %s318
      %s336 = sphi 0, %s336
      %s338 = sphi 0, %s336
      %s339 = sphi 0, %s338
      %s353 = sphi 0, %s339
      %s357 = sphi 0, %s357
      %s359 = sphi 0, %s357
      %s360 = sphi 0, %s359
      %s374 = sphi 0, %s360
      %s378 = sphi 0, %s378
      %s380 = sphi 0, %s378
      %s381 = sphi 0, %s380
      %s395 = sphi 0, %s381
      %s401 = sphi 0, %s403
      %s404 = sphi 0, %s401
      %s405 = sphi 0, %s404
      %s421 = sphi 0, %s405
    $region4: #{tpu_custom_call.1} parent=1 // loop_header_branch
      %32 = sbr.rel (%p30) target = $region8
    $region5: #{tpu_custom_call.1} parent=1 // loop_body
      %s34 = ssub.s32 %s29, 1
      %s35 = ssub.s32 %s29, 2
      %s36 = sadd.s32 %s29, 1
      %s37 = ssub.s32 %s29, %s36
      %p38 = scmp.eq.s32.totalorder %s37, 0
      %s40 = sadd.s32 %s39, 1
      %s41 = scalar_select %p38, %s39, %s40
      %p44 = pneg %p38
      %p45 = scmp.eq.s32.totalorder %s29, 1
      %p46 = por %p44, %p45
      %p47 = scmp.ne.s32.totalorder %s39, %s42
      %p48 = scmp.eq.s32.totalorder %s29, 0
      %p49 = por %p47, %p48
      %p50 = scmp.ne.s32.totalorder %s39, %s42
      %p51 = scmp.eq.s32.totalorder %s34, 1
      %p52 = por %p50, %p51
      %p53 = scmp.ne.s32.totalorder %s42, %s43
      %p54 = scmp.eq.s32.totalorder %s34, 0
      %p55 = por %p53, %p54
      %p56 = scmp.ne.s32.totalorder %s42, %s43
      %p57 = scmp.eq.s32.totalorder %s35, 1
      %p58 = por %p56, %p57
      %p60 = scmp.ne.s32.totalorder %s43, %s59
      %p61 = scmp.eq.s32.totalorder %s35, 0
      %p62 = por %p60, %p61
      %s64 = sadd.s32 %s63, 1
      %p67 = scmp.eq.s32.totalorder %s29, 1
      %p68 = scmp.ne.s32.totalorder %s63, %s65
      %p69 = scmp.eq.s32.totalorder %s29, 0
      %p70 = por %p68, %p69
      %p71 = scmp.ne.s32.totalorder %s63, %s65
      %p72 = scmp.eq.s32.totalorder %s34, 1
      %p73 = por %p71, %p72
      %p74 = scmp.ne.s32.totalorder %s65, %s66
      %p75 = scmp.eq.s32.totalorder %s34, 0
      %p76 = por %p74, %p75
      %p77 = scmp.ne.s32.totalorder %s65, %s66
      %p78 = scmp.eq.s32.totalorder %s35, 1
      %p79 = por %p77, %p78
      %p81 = scmp.ne.s32.totalorder %s66, %s80
      %p82 = scmp.eq.s32.totalorder %s35, 0
      %p83 = por %p81, %p82
      %s85 = sadd.s32 %s84, 1
      %p88 = scmp.eq.s32.totalorder %s29, 1
      %p89 = scmp.ne.s32.totalorder %s84, %s86
      %p90 = scmp.eq.s32.totalorder %s29, 0
      %p91 = por %p89, %p90
      %p92 = scmp.ne.s32.totalorder %s84, %s86
      %p93 = scmp.eq.s32.totalorder %s34, 1
      %p94 = por %p92, %p93
      %p95 = scmp.ne.s32.totalorder %s86, %s87
      %p96 = scmp.eq.s32.totalorder %s34, 0
      %p97 = por %p95, %p96
      %p98 = scmp.ne.s32.totalorder %s86, %s87
      %p99 = scmp.eq.s32.totalorder %s35, 1
      %p100 = por %p98, %p99
      %p102 = scmp.ne.s32.totalorder %s87, %s101
      %p103 = scmp.eq.s32.totalorder %s35, 0
      %p104 = por %p102, %p103
      %s106 = sadd.s32 %s105, 1
      %p109 = scmp.eq.s32.totalorder %s29, 1
      %p110 = scmp.ne.s32.totalorder %s105, %s107
      %p111 = scmp.eq.s32.totalorder %s29, 0
      %p112 = por %p110, %p111
      %p113 = scmp.ne.s32.totalorder %s105, %s107
      %p114 = scmp.eq.s32.totalorder %s34, 1
      %p115 = por %p113, %p114
      %p116 = scmp.ne.s32.totalorder %s107, %s108
      %p117 = scmp.eq.s32.totalorder %s34, 0
      %p118 = por %p116, %p117
      %p119 = scmp.ne.s32.totalorder %s107, %s108
      %p120 = scmp.eq.s32.totalorder %s35, 1
      %p121 = por %p119, %p120
      %p123 = scmp.ne.s32.totalorder %s108, %s122
      %p124 = scmp.eq.s32.totalorder %s35, 0
      %p125 = por %p123, %p124
      %s127 = sadd.s32 %s126, 1
      %p130 = scmp.eq.s32.totalorder %s29, 1
      %p131 = scmp.ne.s32.totalorder %s126, %s128
      %p132 = scmp.eq.s32.totalorder %s29, 0
      %p133 = por %p131, %p132
      %p134 = scmp.ne.s32.totalorder %s126, %s128
      %p135 = scmp.eq.s32.totalorder %s34, 1
      %p136 = por %p134, %p135
      %p137 = scmp.ne.s32.totalorder %s128, %s129
      %p138 = scmp.eq.s32.totalorder %s34, 0
      %p139 = por %p137, %p138
      %p140 = scmp.ne.s32.totalorder %s128, %s129
      %p141 = scmp.eq.s32.totalorder %s35, 1
      %p142 = por %p140, %p141
      %p144 = scmp.ne.s32.totalorder %s129, %s143
      %p145 = scmp.eq.s32.totalorder %s35, 0
      %p146 = por %p144, %p145
      %s148 = sadd.s32 %s147, 1
      %p151 = scmp.eq.s32.totalorder %s29, 1
      %p152 = scmp.ne.s32.totalorder %s147, %s149
      %p153 = scmp.eq.s32.totalorder %s29, 0
      %p154 = por %p152, %p153
      %p155 = scmp.ne.s32.totalorder %s147, %s149
      %p156 = scmp.eq.s32.totalorder %s34, 1
      %p157 = por %p155, %p156
      %p158 = scmp.ne.s32.totalorder %s149, %s150
      %p159 = scmp.eq.s32.totalorder %s34, 0
      %p160 = por %p158, %p159
      %p161 = scmp.ne.s32.totalorder %s149, %s150
      %p162 = scmp.eq.s32.totalorder %s35, 1
      %p163 = por %p161, %p162
      %p165 = scmp.ne.s32.totalorder %s150, %s164
      %p166 = scmp.eq.s32.totalorder %s35, 0
      %p167 = por %p165, %p166
      %s169 = sadd.s32 %s168, 1
      %p172 = scmp.eq.s32.totalorder %s29, 1
      %p173 = scmp.ne.s32.totalorder %s168, %s170
      %p174 = scmp.eq.s32.totalorder %s29, 0
      %p175 = por %p173, %p174
      %p176 = scmp.ne.s32.totalorder %s168, %s170
      %p177 = scmp.eq.s32.totalorder %s34, 1
      %p178 = por %p176, %p177
      %p179 = scmp.ne.s32.totalorder %s170, %s171
      %p180 = scmp.eq.s32.totalorder %s34, 0
      %p181 = por %p179, %p180
      %p182 = scmp.ne.s32.totalorder %s170, %s171
      %p183 = scmp.eq.s32.totalorder %s35, 1
      %p184 = por %p182, %p183
      %p186 = scmp.ne.s32.totalorder %s171, %s185
      %p187 = scmp.eq.s32.totalorder %s35, 0
      %p188 = por %p186, %p187
      %s190 = sadd.s32 %s189, 1
      %p193 = scmp.eq.s32.totalorder %s29, 1
      %p194 = scmp.ne.s32.totalorder %s189, %s191
      %p195 = scmp.eq.s32.totalorder %s29, 0
      %p196 = por %p194, %p195
      %p197 = scmp.ne.s32.totalorder %s189, %s191
      %p198 = scmp.eq.s32.totalorder %s34, 1
      %p199 = por %p197, %p198
      %p200 = scmp.ne.s32.totalorder %s191, %s192
      %p201 = scmp.eq.s32.totalorder %s34, 0
      %p202 = por %p200, %p201
      %p203 = scmp.ne.s32.totalorder %s191, %s192
      %p204 = scmp.eq.s32.totalorder %s35, 1
      %p205 = por %p203, %p204
      %p207 = scmp.ne.s32.totalorder %s192, %s206
      %p208 = scmp.eq.s32.totalorder %s35, 0
      %p209 = por %p207, %p208
      %s211 = sadd.s32 %s210, 1
      %p214 = scmp.eq.s32.totalorder %s29, 1
      %p215 = scmp.ne.s32.totalorder %s210, %s212
      %p216 = scmp.eq.s32.totalorder %s29, 0
      %p217 = por %p215, %p216
      %p218 = scmp.ne.s32.totalorder %s210, %s212
      %p219 = scmp.eq.s32.totalorder %s34, 1
      %p220 = por %p218, %p219
      %p221 = scmp.ne.s32.totalorder %s212, %s213
      %p222 = scmp.eq.s32.totalorder %s34, 0
      %p223 = por %p221, %p222
      %p224 = scmp.ne.s32.totalorder %s212, %s213
      %p225 = scmp.eq.s32.totalorder %s35, 1
      %p226 = por %p224, %p225
      %p228 = scmp.ne.s32.totalorder %s213, %s227
      %p229 = scmp.eq.s32.totalorder %s35, 0
      %p230 = por %p228, %p229
      %s232 = sadd.s32 %s231, 1
      %p235 = scmp.eq.s32.totalorder %s29, 1
      %p236 = scmp.ne.s32.totalorder %s231, %s233
      %p237 = scmp.eq.s32.totalorder %s29, 0
      %p238 = por %p236, %p237
      %p239 = scmp.ne.s32.totalorder %s231, %s233
      %p240 = scmp.eq.s32.totalorder %s34, 1
      %p241 = por %p239, %p240
      %p242 = scmp.ne.s32.totalorder %s233, %s234
      %p243 = scmp.eq.s32.totalorder %s34, 0
      %p244 = por %p242, %p243
      %p245 = scmp.ne.s32.totalorder %s233, %s234
      %p246 = scmp.eq.s32.totalorder %s35, 1
      %p247 = por %p245, %p246
      %p249 = scmp.ne.s32.totalorder %s234, %s248
      %p250 = scmp.eq.s32.totalorder %s35, 0
      %p251 = por %p249, %p250
      %s253 = sadd.s32 %s252, 1
      %p256 = scmp.eq.s32.totalorder %s29, 1
      %p257 = scmp.ne.s32.totalorder %s252, %s254
      %p258 = scmp.eq.s32.totalorder %s29, 0
      %p259 = por %p257, %p258
      %p260 = scmp.ne.s32.totalorder %s252, %s254
      %p261 = scmp.eq.s32.totalorder %s34, 1
      %p262 = por %p260, %p261
      %p263 = scmp.ne.s32.totalorder %s254, %s255
      %p264 = scmp.eq.s32.totalorder %s34, 0
      %p265 = por %p263, %p264
      %p266 = scmp.ne.s32.totalorder %s254, %s255
      %p267 = scmp.eq.s32.totalorder %s35, 1
      %p268 = por %p266, %p267
      %p270 = scmp.ne.s32.totalorder %s255, %s269
      %p271 = scmp.eq.s32.totalorder %s35, 0
      %p272 = por %p270, %p271
      %s274 = sadd.s32 %s273, 1
      %p277 = scmp.eq.s32.totalorder %s29, 1
      %p278 = scmp.ne.s32.totalorder %s273, %s275
      %p279 = scmp.eq.s32.totalorder %s29, 0
      %p280 = por %p278, %p279
      %p281 = scmp.ne.s32.totalorder %s273, %s275
      %p282 = scmp.eq.s32.totalorder %s34, 1
      %p283 = por %p281, %p282
      %p284 = scmp.ne.s32.totalorder %s275, %s276
      %p285 = scmp.eq.s32.totalorder %s34, 0
      %p286 = por %p284, %p285
      %p287 = scmp.ne.s32.totalorder %s275, %s276
      %p288 = scmp.eq.s32.totalorder %s35, 1
      %p289 = por %p287, %p288
      %p291 = scmp.ne.s32.totalorder %s276, %s290
      %p292 = scmp.eq.s32.totalorder %s35, 0
      %p293 = por %p291, %p292
      %s295 = sadd.s32 %s294, 1
      %p298 = scmp.eq.s32.totalorder %s29, 1
      %p299 = scmp.ne.s32.totalorder %s294, %s296
      %p300 = scmp.eq.s32.totalorder %s29, 0
      %p301 = por %p299, %p300
      %p302 = scmp.ne.s32.totalorder %s294, %s296
      %p303 = scmp.eq.s32.totalorder %s34, 1
      %p304 = por %p302, %p303
      %p305 = scmp.ne.s32.totalorder %s296, %s297
      %p306 = scmp.eq.s32.totalorder %s34, 0
      %p307 = por %p305, %p306
      %p308 = scmp.ne.s32.totalorder %s296, %s297
      %p309 = scmp.eq.s32.totalorder %s35, 1
      %p310 = por %p308, %p309
      %p312 = scmp.ne.s32.totalorder %s297, %s311
      %p313 = scmp.eq.s32.totalorder %s35, 0
      %p314 = por %p312, %p313
      %s316 = sadd.s32 %s315, 1
      %p319 = scmp.eq.s32.totalorder %s29, 1
      %p320 = scmp.ne.s32.totalorder %s315, %s317
      %p321 = scmp.eq.s32.totalorder %s29, 0
      %p322 = por %p320, %p321
      %p323 = scmp.ne.s32.totalorder %s315, %s317
      %p324 = scmp.eq.s32.totalorder %s34, 1
      %p325 = por %p323, %p324
      %p326 = scmp.ne.s32.totalorder %s317, %s318
      %p327 = scmp.eq.s32.totalorder %s34, 0
      %p328 = por %p326, %p327
      %p329 = scmp.ne.s32.totalorder %s317, %s318
      %p330 = scmp.eq.s32.totalorder %s35, 1
      %p331 = por %p329, %p330
      %p333 = scmp.ne.s32.totalorder %s318, %s332
      %p334 = scmp.eq.s32.totalorder %s35, 0
      %p335 = por %p333, %p334
      %s337 = sadd.s32 %s336, 1
      %p340 = scmp.eq.s32.totalorder %s29, 1
      %p341 = scmp.ne.s32.totalorder %s336, %s338
      %p342 = scmp.eq.s32.totalorder %s29, 0
      %p343 = por %p341, %p342
      %p344 = scmp.ne.s32.totalorder %s336, %s338
      %p345 = scmp.eq.s32.totalorder %s34, 1
      %p346 = por %p344, %p345
      %p347 = scmp.ne.s32.totalorder %s338, %s339
      %p348 = scmp.eq.s32.totalorder %s34, 0
      %p349 = por %p347, %p348
      %p350 = scmp.ne.s32.totalorder %s338, %s339
      %p351 = scmp.eq.s32.totalorder %s35, 1
      %p352 = por %p350, %p351
      %p354 = scmp.ne.s32.totalorder %s339, %s353
      %p355 = scmp.eq.s32.totalorder %s35, 0
      %p356 = por %p354, %p355
      %s358 = sadd.s32 %s357, 1
      %p361 = scmp.eq.s32.totalorder %s29, 1
      %p362 = scmp.ne.s32.totalorder %s357, %s359
      %p363 = scmp.eq.s32.totalorder %s29, 0
      %p364 = por %p362, %p363
      %p365 = scmp.ne.s32.totalorder %s357, %s359
      %p366 = scmp.eq.s32.totalorder %s34, 1
      %p367 = por %p365, %p366
      %p368 = scmp.ne.s32.totalorder %s359, %s360
      %p369 = scmp.eq.s32.totalorder %s34, 0
      %p370 = por %p368, %p369
      %p371 = scmp.ne.s32.totalorder %s359, %s360
      %p372 = scmp.eq.s32.totalorder %s35, 1
      %p373 = por %p371, %p372
      %p375 = scmp.ne.s32.totalorder %s360, %s374
      %p376 = scmp.eq.s32.totalorder %s35, 0
      %p377 = por %p375, %p376
      %s379 = sadd.s32 %s378, 1
      %p382 = scmp.eq.s32.totalorder %s29, 1
      %p383 = scmp.ne.s32.totalorder %s378, %s380
      %p384 = scmp.eq.s32.totalorder %s29, 0
      %p385 = por %p383, %p384
      %p386 = scmp.ne.s32.totalorder %s378, %s380
      %p387 = scmp.eq.s32.totalorder %s34, 1
      %p388 = por %p386, %p387
      %p389 = scmp.ne.s32.totalorder %s380, %s381
      %p390 = scmp.eq.s32.totalorder %s34, 0
      %p391 = por %p389, %p390
      %p392 = scmp.ne.s32.totalorder %s380, %s381
      %p393 = scmp.eq.s32.totalorder %s35, 1
      %p394 = por %p392, %p393
      %p396 = scmp.ne.s32.totalorder %s381, %s395
      %p397 = scmp.eq.s32.totalorder %s35, 0
      %p398 = por %p396, %p397
      %s399 = ssub.s32 %s29, %s36
      %p400 = scmp.eq.s32.totalorder %s399, 0
      %s402 = sadd.s32 %s401, 1
      %s403 = scalar_select %p400, %s401, %s402
      %p406 = pneg %p400
      %p407 = scmp.eq.s32.totalorder %s29, 1
      %p408 = por %p406, %p407
      %p409 = scmp.ne.s32.totalorder %s401, %s404
      %p410 = scmp.eq.s32.totalorder %s29, 0
      %p411 = por %p409, %p410
      %p412 = scmp.ne.s32.totalorder %s401, %s404
      %p413 = scmp.eq.s32.totalorder %s34, 1
      %p414 = por %p412, %p413
      %p415 = scmp.ne.s32.totalorder %s404, %s405
      %p416 = scmp.eq.s32.totalorder %s34, 0
      %p417 = por %p415, %p416
      %p418 = scmp.ne.s32.totalorder %s404, %s405
      %p419 = scmp.eq.s32.totalorder %s35, 1
      %p420 = por %p418, %p419
      %p422 = scmp.ne.s32.totalorder %s405, %s421
      %p423 = scmp.eq.s32.totalorder %s35, 0
      %p424 = por %p422, %p423
      %p425 = scmp.le.s32.totalorder 1, %s29
      %p426 = scmp.lt.s32.totalorder %s29, 3
      %p427 = pnand %p425, %p426
      %p428 = pneg %p427
      // Predicated region
      $region9: #{tpu_custom_call.1} parent=5 // pred_check
        _
      $region10: #{tpu_custom_call.1} parent=5 // pred_check_branch
        %430 = sbr.rel (%p427) target = $region12
      $region11: #{tpu_custom_call.1} parent=5 // pred_region
        %s431 = ssub.s32 %s29, 1
        // Predicated region
        $region13: #{tpu_custom_call.1} parent=11 // pred_check
          %p432 = pneg %p76
        $region14: #{tpu_custom_call.1} parent=11 // pred_check_branch
          %434 = sbr.rel (%p432) target = $region16
        $region15: #{tpu_custom_call.1} parent=11 // pred_region
          %s436 = ssub.s32 64, 64
          %437 = vsyncadd [#allocation3], %s436
          %s439 = sshll.u32 [#allocation2], 4
          %s440 = int_to_ptr.vmem [resolvable:$true] %s439
          %442 = dma.hbm_to_vmem [thread:$0]  %s1, 64, %s440, [#allocation3]
        $region16: #{tpu_custom_call.1} parent=11 // pred_fallthru
          _
        // Predicated region
        $region17: #{tpu_custom_call.1} parent=11 // pred_check
          %p443 = pneg %p97
        $region18: #{tpu_custom_call.1} parent=11 // pred_check_branch
          %445 = sbr.rel (%p443) target = $region20
        $region19: #{tpu_custom_call.1} parent=11 // pred_region
          %s447 = ssub.s32 32, 32
          %448 = vsyncadd [#allocation5], %s447
          %s450 = sshll.u32 [#allocation4], 4
          %s451 = int_to_ptr.vmem [resolvable:$true] %s450
          %453 = dma.hbm_to_vmem [thread:$0]  %s2, 32, %s451, [#allocation5]
        $region20: #{tpu_custom_call.1} parent=11 // pred_fallthru
          _
        // Predicated region
        $region21: #{tpu_custom_call.1} parent=11 // pred_check
          %p454 = pneg %p118
        $region22: #{tpu_custom_call.1} parent=11 // pred_check_branch
          %456 = sbr.rel (%p454) target = $region24
        $region23: #{tpu_custom_call.1} parent=11 // pred_region
          _
        $region24: #{tpu_custom_call.1} parent=11 // pred_fallthru
          _
        // Predicated region
        $region25: #{tpu_custom_call.1} parent=11 // pred_check
          %p457 = pneg %p139
        $region26: #{tpu_custom_call.1} parent=11 // pred_check_branch
          %459 = sbr.rel (%p457) target = $region28
        $region27: #{tpu_custom_call.1} parent=11 // pred_region
          _
        $region28: #{tpu_custom_call.1} parent=11 // pred_fallthru
          _
        // Predicated region
        $region29: #{tpu_custom_call.1} parent=11 // pred_check
          %p460 = pneg %p160
        $region30: #{tpu_custom_call.1} parent=11 // pred_check_branch
          %462 = sbr.rel (%p460) target = $region32
        $region31: #{tpu_custom_call.1} parent=11 // pred_region
          %s464 = ssub.s32 1024, 1024
          %465 = vsyncadd [#allocation5], %s464
          %s466 = sshll.u32 [#allocation6], 4
          %s467 = int_to_ptr.vmem [resolvable:$true] %s466
          %472 = dma.hbm_to_vmem [thread:$0]  %s5, 1024, %s467, [#allocation5], 64, 64, 4
        $region32: #{tpu_custom_call.1} parent=11 // pred_fallthru
          _
        // Predicated region
        $region33: #{tpu_custom_call.1} parent=11 // pred_check
          %p473 = pneg %p181
        $region34: #{tpu_custom_call.1} parent=11 // pred_check_branch
          %475 = sbr.rel (%p473) target = $region36
        $region35: #{tpu_custom_call.1} parent=11 // pred_region
          %s477 = ssub.s32 16, 16
          %478 = vsyncadd [#allocation8], %s477
          %s480 = sshll.u32 [#allocation7], 4
          %s481 = int_to_ptr.vmem [resolvable:$true] %s480
          %483 = dma.hbm_to_vmem [thread:$0]  %s6, 16, %s481, [#allocation8]
        $region36: #{tpu_custom_call.1} parent=11 // pred_fallthru
          _
        // Predicated region
        $region37: #{tpu_custom_call.1} parent=11 // pred_check
          %p484 = pneg %p202
        $region38: #{tpu_custom_call.1} parent=11 // pred_check_branch
          %486 = sbr.rel (%p484) target = $region40
        $region39: #{tpu_custom_call.1} parent=11 // pred_region
          %s488 = ssub.s32 1024, 1024
          %489 = vsyncadd [#allocation8], %s488
          %s490 = sshll.u32 [#allocation9], 4
          %s491 = int_to_ptr.vmem [resolvable:$true] %s490
          %496 = dma.hbm_to_vmem [thread:$0]  %s7, 1024, %s491, [#allocation8], 64, 64, 4
        $region40: #{tpu_custom_call.1} parent=11 // pred_fallthru
          _
        // Predicated region
        $region41: #{tpu_custom_call.1} parent=11 // pred_check
          %p497 = pneg %p223
        $region42: #{tpu_custom_call.1} parent=11 // pred_check_branch
          %499 = sbr.rel (%p497) target = $region44
        $region43: #{tpu_custom_call.1} parent=11 // pred_region
          %s501 = ssub.s32 16, 16
          %502 = vsyncadd [#allocation11], %s501
          %s504 = sshll.u32 [#allocation10], 4
          %s505 = int_to_ptr.vmem [resolvable:$true] %s504
          %507 = dma.hbm_to_vmem [thread:$0]  %s8, 16, %s505, [#allocation11]
        $region44: #{tpu_custom_call.1} parent=11 // pred_fallthru
          _
        // Predicated region
        $region45: #{tpu_custom_call.1} parent=11 // pred_check
          %p508 = pneg %p244
        $region46: #{tpu_custom_call.1} parent=11 // pred_check_branch
          %510 = sbr.rel (%p508) target = $region48
        $region47: #{tpu_custom_call.1} parent=11 // pred_region
          %s512 = ssub.s32 1024, 1024
          %513 = vsyncadd [#allocation11], %s512
          %s514 = sshll.u32 [#allocation12], 4
          %s515 = int_to_ptr.vmem [resolvable:$true] %s514
          %520 = dma.hbm_to_vmem [thread:$0]  %s9, 1024, %s515, [#allocation11], 64, 64, 4
        $region48: #{tpu_custom_call.1} parent=11 // pred_fallthru
          _
        // Predicated region
        $region49: #{tpu_custom_call.1} parent=11 // pred_check
          %p521 = pneg %p265
        $region50: #{tpu_custom_call.1} parent=11 // pred_check_branch
          %523 = sbr.rel (%p521) target = $region52
        $region51: #{tpu_custom_call.1} parent=11 // pred_region
          %s525 = ssub.s32 16, 16
          %526 = vsyncadd [#allocation14], %s525
          %s528 = sshll.u32 [#allocation13], 4
          %s529 = int_to_ptr.vmem [resolvable:$true] %s528
          %531 = dma.hbm_to_vmem [thread:$0]  %s10, 16, %s529, [#allocation14]
        $region52: #{tpu_custom_call.1} parent=11 // pred_fallthru
          _
        // Predicated region
        $region53: #{tpu_custom_call.1} parent=11 // pred_check
          %p532 = pneg %p286
        $region54: #{tpu_custom_call.1} parent=11 // pred_check_branch
          %534 = sbr.rel (%p532) target = $region56
        $region55: #{tpu_custom_call.1} parent=11 // pred_region
          _
        $region56: #{tpu_custom_call.1} parent=11 // pred_fallthru
          _
        // Predicated region
        $region57: #{tpu_custom_call.1} parent=11 // pred_check
          %p535 = pneg %p307
        $region58: #{tpu_custom_call.1} parent=11 // pred_check_branch
          %537 = sbr.rel (%p535) target = $region60
        $region59: #{tpu_custom_call.1} parent=11 // pred_region
          %s539 = ssub.s32 16, 16
          %540 = vsyncadd [#allocation14], %s539
          %s542 = sshll.u32 [#allocation15], 4
          %s543 = int_to_ptr.vmem [resolvable:$true] %s542
          %545 = dma.hbm_to_vmem [thread:$0]  %s12, 16, %s543, [#allocation14]
        $region60: #{tpu_custom_call.1} parent=11 // pred_fallthru
          _
        // Predicated region
        $region61: #{tpu_custom_call.1} parent=11 // pred_check
          %p546 = pneg %p328
        $region62: #{tpu_custom_call.1} parent=11 // pred_check_branch
          %548 = sbr.rel (%p546) target = $region64
        $region63: #{tpu_custom_call.1} parent=11 // pred_region
          %s550 = ssub.s32 2048, 2048
          %551 = vsyncadd [#allocation17], %s550
          %s552 = sshll.u32 [#allocation16], 4
          %s553 = int_to_ptr.vmem [resolvable:$true] %s552
          %558 = dma.hbm_to_vmem [thread:$0]  %s13, 2048, %s553, [#allocation17], 128, 128, 8
        $region64: #{tpu_custom_call.1} parent=11 // pred_fallthru
          _
        // Predicated region
        $region65: #{tpu_custom_call.1} parent=11 // pred_check
          %p559 = pneg %p349
        $region66: #{tpu_custom_call.1} parent=11 // pred_check_branch
          %561 = sbr.rel (%p559) target = $region68
        $region67: #{tpu_custom_call.1} parent=11 // pred_region
          _
        $region68: #{tpu_custom_call.1} parent=11 // pred_fallthru
          _
        // Predicated region
        $region69: #{tpu_custom_call.1} parent=11 // pred_check
          %p562 = pneg %p370
        $region70: #{tpu_custom_call.1} parent=11 // pred_check_branch
          %564 = sbr.rel (%p562) target = $region72
        $region71: #{tpu_custom_call.1} parent=11 // pred_region
          _
        $region72: #{tpu_custom_call.1} parent=11 // pred_fallthru
          _
        // Predicated region
        $region73: #{tpu_custom_call.1} parent=11 // pred_check
          %p565 = pneg %p391
        $region74: #{tpu_custom_call.1} parent=11 // pred_check_branch
          %567 = sbr.rel (%p565) target = $region76
        $region75: #{tpu_custom_call.1} parent=11 // pred_region
          _
        $region76: #{tpu_custom_call.1} parent=11 // pred_fallthru
          _
      $region12: #{tpu_custom_call.1} parent=5 // pred_fallthru
        _
      %p568 = scmp.lt.s32.totalorder %s29, 2
      // Predicated region
      $region77: #{tpu_custom_call.1} parent=5 // pred_check
        %p569 = pneg %p568
      $region78: #{tpu_custom_call.1} parent=5 // pred_check_branch
        %571 = sbr.rel (%p569) target = $region80
      $region79: #{tpu_custom_call.1} parent=5 // pred_region
        // Predicated region
        $region81: #{tpu_custom_call.1} parent=79 // pred_check
          %p572 = pneg %p49
        $region82: #{tpu_custom_call.1} parent=79 // pred_check_branch
          %574 = sbr.rel (%p572) target = $region84
        $region83: #{tpu_custom_call.1} parent=79 // pred_region
          %p575 = scmp.lt.s32.totalorder %s29, 1
          %s576 = scalar_select %p575, %s29, 1
          %s577 = smul.addr %s576, 8
          %s578 = scalar_lea.vmem %s0, %s577
        $region84: #{tpu_custom_call.1} parent=79 // pred_fallthru
          _
      $region80: #{tpu_custom_call.1} parent=5 // pred_fallthru
        _
      %p579 = scmp.le.s32.totalorder 1, %s29
      %p580 = scmp.lt.s32.totalorder %s29, 3
      %p581 = pnand %p579, %p580
      %p582 = pneg %p581
      // Predicated region
      $region85: #{tpu_custom_call.1} parent=5 // pred_check
        _
      $region86: #{tpu_custom_call.1} parent=5 // pred_check_branch
        %584 = sbr.rel (%p581) target = $region88
      $region87: #{tpu_custom_call.1} parent=5 // pred_region
        %s585 = ssub.s32 %s29, 1
        // Predicated region
        $region89: #{tpu_custom_call.1} parent=87 // pred_check
          %p586 = pneg %p76
        $region90: #{tpu_custom_call.1} parent=87 // pred_check_branch
          %588 = sbr.rel (%p586) target = $region92
        $region91: #{tpu_custom_call.1} parent=87 // pred_region
          %589 = dma.done [#allocation3], 64
        $region92: #{tpu_custom_call.1} parent=87 // pred_fallthru
          _
        // Predicated region
        $region93: #{tpu_custom_call.1} parent=87 // pred_check
          %p590 = pneg %p97
        $region94: #{tpu_custom_call.1} parent=87 // pred_check_branch
          %592 = sbr.rel (%p590) target = $region96
        $region95: #{tpu_custom_call.1} parent=87 // pred_region
          %593 = dma.done [#allocation5], 32
        $region96: #{tpu_custom_call.1} parent=87 // pred_fallthru
          _
        // Predicated region
        $region97: #{tpu_custom_call.1} parent=87 // pred_check
          %p594 = pneg %p160
        $region98: #{tpu_custom_call.1} parent=87 // pred_check_branch
          %596 = sbr.rel (%p594) target = $region100
        $region99: #{tpu_custom_call.1} parent=87 // pred_region
          %597 = dma.done [#allocation5], 1024
        $region100: #{tpu_custom_call.1} parent=87 // pred_fallthru
          _
        // Predicated region
        $region101: #{tpu_custom_call.1} parent=87 // pred_check
          %p598 = pneg %p181
        $region102: #{tpu_custom_call.1} parent=87 // pred_check_branch
          %600 = sbr.rel (%p598) target = $region104
        $region103: #{tpu_custom_call.1} parent=87 // pred_region
          %601 = dma.done [#allocation8], 16
        $region104: #{tpu_custom_call.1} parent=87 // pred_fallthru
          _
        // Predicated region
        $region105: #{tpu_custom_call.1} parent=87 // pred_check
          %p602 = pneg %p202
        $region106: #{tpu_custom_call.1} parent=87 // pred_check_branch
          %604 = sbr.rel (%p602) target = $region108
        $region107: #{tpu_custom_call.1} parent=87 // pred_region
          %605 = dma.done [#allocation8], 1024
        $region108: #{tpu_custom_call.1} parent=87 // pred_fallthru
          _
        // Predicated region
        $region109: #{tpu_custom_call.1} parent=87 // pred_check
          %p606 = pneg %p223
        $region110: #{tpu_custom_call.1} parent=87 // pred_check_branch
          %608 = sbr.rel (%p606) target = $region112
        $region111: #{tpu_custom_call.1} parent=87 // pred_region
          %609 = dma.done [#allocation11], 16
        $region112: #{tpu_custom_call.1} parent=87 // pred_fallthru
          _
        // Predicated region
        $region113: #{tpu_custom_call.1} parent=87 // pred_check
          %p610 = pneg %p244
        $region114: #{tpu_custom_call.1} parent=87 // pred_check_branch
          %612 = sbr.rel (%p610) target = $region116
        $region115: #{tpu_custom_call.1} parent=87 // pred_region
          %613 = dma.done [#allocation11], 1024
        $region116: #{tpu_custom_call.1} parent=87 // pred_fallthru
          _
        // Predicated region
        $region117: #{tpu_custom_call.1} parent=87 // pred_check
          %p614 = pneg %p265
        $region118: #{tpu_custom_call.1} parent=87 // pred_check_branch
          %616 = sbr.rel (%p614) target = $region120
        $region119: #{tpu_custom_call.1} parent=87 // pred_region
          %617 = dma.done [#allocation14], 16
        $region120: #{tpu_custom_call.1} parent=87 // pred_fallthru
          _
        // Predicated region
        $region121: #{tpu_custom_call.1} parent=87 // pred_check
          %p618 = pneg %p307
        $region122: #{tpu_custom_call.1} parent=87 // pred_check_branch
          %620 = sbr.rel (%p618) target = $region124
        $region123: #{tpu_custom_call.1} parent=87 // pred_region
          %621 = dma.done [#allocation14], 16
        $region124: #{tpu_custom_call.1} parent=87 // pred_fallthru
          _
        // Predicated region
        $region125: #{tpu_custom_call.1} parent=87 // pred_check
          %p622 = pneg %p328
        $region126: #{tpu_custom_call.1} parent=87 // pred_check_branch
          %624 = sbr.rel (%p622) target = $region128
        $region127: #{tpu_custom_call.1} parent=87 // pred_region
          %625 = dma.done [#allocation17], 2048
        $region128: #{tpu_custom_call.1} parent=87 // pred_fallthru
          _
        %p626 = scmp.lt.s32.totalorder %s34, 1
        %s627 = scalar_select %p626, %s34, 1
        %s628 = smul.addr %s627, 8
        %s629 = scalar_lea.vmem %s0, %s628
        %p630 = pneg %p55
        %p631 = pneg %p52
        %p632 = pneg %p76
        %p633 = pneg %p73
        %p634 = pneg %p97
        %p635 = pneg %p94
        %p636 = pneg %p118
        %p637 = pneg %p115
        %p638 = pneg %p139
        %p639 = pneg %p136
        %p640 = pneg %p160
        %p641 = pneg %p157
        %p642 = pneg %p181
        %p643 = pneg %p178
        %p644 = pneg %p202
        %p645 = pneg %p199
        %p646 = pneg %p223
        %p647 = pneg %p220
        %p648 = pneg %p244
        %p649 = pneg %p241
        %p650 = pneg %p265
        %p651 = pneg %p262
        %p652 = pneg %p286
        %p653 = pneg %p283
        %p654 = pneg %p307
        %p655 = pneg %p304
        %p656 = pneg %p328
        %p657 = pneg %p325
        %p658 = pneg %p349
        %p659 = pneg %p346
        %p660 = pneg %p370
        %p661 = pneg %p367
        %p662 = pneg %p391
        %p663 = pneg %p388
        %p664 = pneg %p417
        %p665 = pneg %p414
        %p666 = scmp.lt.s32.totalorder %s34, 1
        %s667 = scalar_select %p666, %s34, 1
        %s668 = smul.addr %s667, 8
        %s669 = scalar_lea.vmem %s17, %s668
        %p670 = scmp.lt.s32.totalorder %s34, 1
        %s671 = scalar_select %p670, %s34, 1
        %s672 = smul.addr %s671, 8
        %s673 = scalar_lea.vmem %s0, %s672
        %p674 = scmp.lt.s32.totalorder %s34, 1
        %s675 = scalar_select %p674, %s34, 1
        %s676 = smul.addr %s675, 8
        %s677 = scalar_lea.vmem %s17, %s676
        %v679 = vld [vmem:[%s673] sm:$0xff]
        %v680 = vpack.c.bf16 %v679, %v679
        %v681 = vld [vmem:[#allocation2] sm:$0xf]
        %v682 = vld [vmem:[#allocation4] sm:$0x3]
        %v684 = vlaneseq
        %v685 = vshrl.u32 %v684, 7
        %v686 = vsub.s32 0, %v685
        %v687 = vrot.slane %v682, %v686
        %v688 = vlaneseq
        %v689 = vshrl.u32 %v688, 7
        %v690 = vsub.s32 1, %v689
        %v691 = vrot.slane %v682, %v690
        %v696 = vunpack.c.l.s4 1983009808
        %v697 = vunpack.c.0.s8 %v696
        %v698 = vlaneseq
        %v699 = vshrl.u32 %v698, 7
        %v700 = vsub.s32 %v697, %v699
        %v701 = vrot.slane %v681, %v700
        %v702 = vcombine.high %v701, %v701
        %vm703 = vcmask 31744
        %v705 = vsel %vm703, %v680, 0
        %vm707 = vcmask 1041408
        %v709 = vsel %vm707, %v701, 0
        %v712 = vsel %vm707, %v702, 0
        %714 = vmatprep.subr.bf16.mxu0 %v712
        %715 = vmatpush1.bf16.msra.mxu0 %v709
        %716 = vmatprep.subr.bf16.mxu0 0
        %717 = vmatpush1.bf16.msra.mxu0 0
        %718 = vmatprep.subr.bf16.mxu0 0
        %719 = vmatpush1.bf16.msra.mxu0 0
        %720 = vmatprep.subr.bf16.mxu0 0
        %721 = vmatpush1.bf16.msra.mxu0 0
        %722 = vmatprep.subr.bf16.mxu0 0
        %723 = vmatpush1.bf16.msra.mxu0 0
        %724 = vmatprep.subr.bf16.mxu0 0
        %725 = vmatpush1.bf16.msra.mxu0 0
        %726 = vmatprep.subr.bf16.mxu0 0
        %727 = vmatpush1.bf16.msra.mxu0 0
        %728 = vmatprep.subr.bf16.mxu0 0
        %729 = vmatpush1.bf16.msra.mxu0 0
        %730 = vmatprep.subr.bf16.mxu0 0
        %731 = vmatpush1.bf16.msra.mxu0 0
        %732 = vmatprep.subr.bf16.mxu0 0
        %733 = vmatpush1.bf16.msra.mxu0 0
        %734 = vmatprep.subr.bf16.mxu0 0
        %735 = vmatpush1.bf16.msra.mxu0 0
        %736 = vmatprep.subr.bf16.mxu0 0
        %737 = vmatpush1.bf16.msra.mxu0 0
        %738 = vmatprep.subr.bf16.mxu0 0
        %739 = vmatpush1.bf16.msra.mxu0 0
        %740 = vmatprep.subr.bf16.mxu0 0
        %741 = vmatpush1.bf16.msra.mxu0 0
        %742 = vmatprep.subr.bf16.mxu0 0
        %743 = vmatpush1.bf16.msra.mxu0 0
        %744 = vmatprep.subr.bf16.mxu0 0
        %745 = vmatpush1.bf16.msra.mxu0 0
        %746 = vmatprep.mubr.bf16.mxu0 0
        %747 = vmatmul.mubr.bf16.gmra.mrb[0].mxu0 %v705
        %v748 = vpop.f32.mrb[0].mxu0
        %v749 = vadd.f32 %v687, %v748
        %v750 = vpop.f32.mrb[0].mxu0
        %v751 = vadd.f32 %v691, %v750
        %v752 = vpop.f32.mrb[0].mxu0
        %v753 = vpop.f32.mrb[0].mxu0
        %754 = vdwg.mxu0
        %v755 = vtanh.pop %v749
        %v756 = vtanh.pop %v751
        %v757 = vpack.c.bf16 %v755, %v755
        %v758 = vpack.c.bf16 %v756, %v756
        %v759 = vld [vmem:[%s3] sm:$0xf]
        %v760 = vld [vmem:[%s3 + $0x4] sm:$0xf]
        %v761 = vld [vmem:[%s3 + $0x8] sm:$0xf]
        %v762 = vld [vmem:[%s3 + $0xc] sm:$0xf]
        %v763 = vld [vmem:[%s3 + $0x10] sm:$0xf]
        %v764 = vld [vmem:[%s3 + $0x14] sm:$0xf]
        %v765 = vld [vmem:[%s3 + $0x18] sm:$0xf]
        %v766 = vld [vmem:[%s3 + $0x1c] sm:$0xf]
        %v767 = vld [vmem:[%s3 + $0x20] sm:$0xf]
        %v768 = vld [vmem:[%s3 + $0x24] sm:$0xf]
        %v769 = vld [vmem:[%s3 + $0x28] sm:$0xf]
        %v770 = vld [vmem:[%s3 + $0x2c] sm:$0xf]
        %v771 = vld [vmem:[%s3 + $0x30] sm:$0xf]
        %v772 = vld [vmem:[%s3 + $0x34] sm:$0xf]
        %v773 = vld [vmem:[%s3 + $0x38] sm:$0xf]
        %v774 = vld [vmem:[%s3 + $0x3c] sm:$0xf]
        %v775 = vld [vmem:[%s3 + $0x40] sm:$0xf]
        %v776 = vld [vmem:[%s3 + $0x44] sm:$0xf]
        %v777 = vld [vmem:[%s3 + $0x48] sm:$0xf]
        %v778 = vld [vmem:[%s3 + $0x4c] sm:$0xf]
        %v779 = vld [vmem:[%s3 + $0x50] sm:$0xf]
        %v780 = vld [vmem:[%s3 + $0x54] sm:$0xf]
        %v781 = vld [vmem:[%s3 + $0x58] sm:$0xf]
        %v782 = vld [vmem:[%s3 + $0x5c] sm:$0xf]
        %v783 = vld [vmem:[%s3 + $0x60] sm:$0xf]
        %v784 = vld [vmem:[%s3 + $0x64] sm:$0xf]
        %v785 = vld [vmem:[%s3 + $0x68] sm:$0xf]
        %v786 = vld [vmem:[%s3 + $0x6c] sm:$0xf]
        %v787 = vld [vmem:[%s3 + $0x70] sm:$0xf]
        %v788 = vld [vmem:[%s3 + $0x74] sm:$0xf]
        %v789 = vld [vmem:[%s3 + $0x78] sm:$0xf]
        %v790 = vld [vmem:[%s3 + $0x7c] sm:$0xf]
        %v791 = vld [vmem:[%s4] sm:$0x1]
        %v793 = vlaneseq
        %v794 = vshrl.u32 %v793, 7
        %v795 = vsub.s32 0, %v794
        %v796 = vrot.slane %v791, %v795
        %v830 = vunpack.c.l.b16 %v759
        %v831 = vunpack.c.l.b16 %v760
        %v832 = vunpack.c.l.b16 %v761
        %v833 = vunpack.c.l.b16 %v762
        %v834 = vunpack.c.l.b16 %v763
        %v835 = vunpack.c.l.b16 %v764
        %v836 = vunpack.c.l.b16 %v765
        %v837 = vunpack.c.l.b16 %v766
        %v838 = vunpack.c.l.b16 %v767
        %v839 = vunpack.c.l.b16 %v768
        %v840 = vunpack.c.l.b16 %v769
        %v841 = vunpack.c.l.b16 %v770
        %v842 = vunpack.c.l.b16 %v771
        %v843 = vunpack.c.l.b16 %v772
        %v844 = vunpack.c.l.b16 %v773
        %v845 = vunpack.c.l.b16 %v774
        %v846 = vunpack.c.l.b16 %v775
        %v847 = vunpack.c.l.b16 %v776
        %v848 = vunpack.c.l.b16 %v777
        %v849 = vunpack.c.l.b16 %v778
        %v850 = vunpack.c.l.b16 %v779
        %v851 = vunpack.c.l.b16 %v780
        %v852 = vunpack.c.l.b16 %v781
        %v853 = vunpack.c.l.b16 %v782
        %v854 = vunpack.c.l.b16 %v783
        %v855 = vunpack.c.l.b16 %v784
        %v856 = vunpack.c.l.b16 %v785
        %v857 = vunpack.c.l.b16 %v786
        %v858 = vunpack.c.l.b16 %v787
        %v859 = vunpack.c.l.b16 %v788
        %v860 = vunpack.c.l.b16 %v789
        %v861 = vunpack.c.l.b16 %v790
        %v862 = vpack.c.b16 %v831, %v830
        %v863 = vpack.c.b16 %v833, %v832
        %v864 = vpack.c.b16 %v835, %v834
        %v865 = vpack.c.b16 %v837, %v836
        %v866 = vpack.c.b16 %v839, %v838
        %v867 = vpack.c.b16 %v841, %v840
        %v868 = vpack.c.b16 %v843, %v842
        %v869 = vpack.c.b16 %v845, %v844
        %v870 = vpack.c.b16 %v847, %v846
        %v871 = vpack.c.b16 %v849, %v848
        %v872 = vpack.c.b16 %v851, %v850
        %v873 = vpack.c.b16 %v853, %v852
        %v874 = vpack.c.b16 %v855, %v854
        %v875 = vpack.c.b16 %v857, %v856
        %v876 = vpack.c.b16 %v859, %v858
        %v877 = vpack.c.b16 %v861, %v860
        %894 = vmatprep.subr.bf16.mxu0 0
        %895 = vmatpush1.bf16.msra.mxu0 %v862
        %896 = vmatprep.subr.bf16.mxu0 0
        %897 = vmatpush1.bf16.msra.mxu0 %v863
        %898 = vmatprep.subr.bf16.mxu0 0
        %899 = vmatpush1.bf16.msra.mxu0 %v864
        %900 = vmatprep.subr.bf16.mxu0 0
        %901 = vmatpush1.bf16.msra.mxu0 %v865
        %902 = vmatprep.subr.bf16.mxu0 0
        %903 = vmatpush1.bf16.msra.mxu0 %v866
        %904 = vmatprep.subr.bf16.mxu0 0
        %905 = vmatpush1.bf16.msra.mxu0 %v867
        %906 = vmatprep.subr.bf16.mxu0 0
        %907 = vmatpush1.bf16.msra.mxu0 %v868
        %908 = vmatprep.subr.bf16.mxu0 0
        %909 = vmatpush1.bf16.msra.mxu0 %v869
        %910 = vmatprep.subr.bf16.mxu0 0
        %911 = vmatpush1.bf16.msra.mxu0 %v870
        %912 = vmatprep.subr.bf16.mxu0 0
        %913 = vmatpush1.bf16.msra.mxu0 %v871
        %914 = vmatprep.subr.bf16.mxu0 0
        %915 = vmatpush1.bf16.msra.mxu0 %v872
        %916 = vmatprep.subr.bf16.mxu0 0
        %917 = vmatpush1.bf16.msra.mxu0 %v873
        %918 = vmatprep.subr.bf16.mxu0 0
        %919 = vmatpush1.bf16.msra.mxu0 %v874
        %920 = vmatprep.subr.bf16.mxu0 0
        %921 = vmatpush1.bf16.msra.mxu0 %v875
        %922 = vmatprep.subr.bf16.mxu0 0
        %923 = vmatpush1.bf16.msra.mxu0 %v876
        %924 = vmatprep.subr.bf16.mxu0 0
        %925 = vmatpush1.bf16.msra.mxu0 %v877
        %926 = vmatprep.mubr.bf16.mxu0 %v758
        %927 = vmatmul.mubr.bf16.gmra.mrb[0].mxu0 %v757
        %v928 = vpop.f32.mrb[0].mxu0
        %v929 = vadd.f32 %v796, %v928
        %v930 = vpop.f32.mrb[0].mxu0
        %v931 = vpop.f32.mrb[0].mxu0
        %v932 = vpop.f32.mrb[0].mxu0
        %933 = vdwg.mxu0
        %v934 = vtanh.pop %v929
        %v935 = vpack.c.bf16 %v934, %v934
        %v936 = vld [vmem:[#allocation6] sm:$0xf]
        %v937 = vld [vmem:[#allocation6 + $0x4] sm:$0xf]
        %v938 = vld [vmem:[#allocation6 + $0x8] sm:$0xf]
        %v939 = vld [vmem:[#allocation6 + $0xc] sm:$0xf]
        %v940 = vld [vmem:[#allocation6 + $0x10] sm:$0xf]
        %v941 = vld [vmem:[#allocation6 + $0x14] sm:$0xf]
        %v942 = vld [vmem:[#allocation6 + $0x18] sm:$0xf]
        %v943 = vld [vmem:[#allocation6 + $0x1c] sm:$0xf]
        %v944 = vld [vmem:[#allocation6 + $0x20] sm:$0xf]
        %v945 = vld [vmem:[#allocation6 + $0x24] sm:$0xf]
        %v946 = vld [vmem:[#allocation6 + $0x28] sm:$0xf]
        %v947 = vld [vmem:[#allocation6 + $0x2c] sm:$0xf]
        %v948 = vld [vmem:[#allocation6 + $0x30] sm:$0xf]
        %v949 = vld [vmem:[#allocation6 + $0x34] sm:$0xf]
        %v950 = vld [vmem:[#allocation6 + $0x38] sm:$0xf]
        %v951 = vld [vmem:[#allocation6 + $0x3c] sm:$0xf]
        %v952 = vld [vmem:[#allocation7] sm:$0x1]
        %v954 = vlaneseq
        %v955 = vshrl.u32 %v954, 7
        %v956 = vsub.s32 0, %v955
        %v957 = vrot.slane %v952, %v956
        %v975 = vunpack.c.l.b16 %v936
        %v976 = vunpack.c.l.b16 %v937
        %v977 = vunpack.c.l.b16 %v938
        %v978 = vunpack.c.l.b16 %v939
        %v979 = vunpack.c.l.b16 %v940
        %v980 = vunpack.c.l.b16 %v941
        %v981 = vunpack.c.l.b16 %v942
        %v982 = vunpack.c.l.b16 %v943
        %v983 = vunpack.c.l.b16 %v944
        %v984 = vunpack.c.l.b16 %v945
        %v985 = vunpack.c.l.b16 %v946
        %v986 = vunpack.c.l.b16 %v947
        %v987 = vunpack.c.l.b16 %v948
        %v988 = vunpack.c.l.b16 %v949
        %v989 = vunpack.c.l.b16 %v950
        %v990 = vunpack.c.l.b16 %v951
        %v991 = vpack.c.b16 %v976, %v975
        %v992 = vpack.c.b16 %v978, %v977
        %v993 = vpack.c.b16 %v980, %v979
        %v994 = vpack.c.b16 %v982, %v981
        %v995 = vpack.c.b16 %v984, %v983
        %v996 = vpack.c.b16 %v986, %v985
        %v997 = vpack.c.b16 %v988, %v987
        %v998 = vpack.c.b16 %v990, %v989
        %1007 = vmatprep.subr.bf16.mxu0 0
        %1008 = vmatpush1.bf16.msra.mxu0 %v991
        %1009 = vmatprep.subr.bf16.mxu0 0
        %1010 = vmatpush1.bf16.msra.mxu0 %v992
        %1011 = vmatprep.subr.bf16.mxu0 0
        %1012 = vmatpush1.bf16.msra.mxu0 %v993
        %1013 = vmatprep.subr.bf16.mxu0 0
        %1014 = vmatpush1.bf16.msra.mxu0 %v994
        %1015 = vmatprep.subr.bf16.mxu0 0
        %1016 = vmatpush1.bf16.msra.mxu0 %v995
        %1017 = vmatprep.subr.bf16.mxu0 0
        %1018 = vmatpush1.bf16.msra.mxu0 %v996
        %1019 = vmatprep.subr.bf16.mxu0 0
        %1020 = vmatpush1.bf16.msra.mxu0 %v997
        %1021 = vmatprep.subr.bf16.mxu0 0
        %1022 = vmatpush1.bf16.msra.mxu0 %v998
        %1023 = vmatprep.subr.bf16.mxu0 0
        %1024 = vmatpush1.bf16.msra.mxu0 0
        %1025 = vmatprep.subr.bf16.mxu0 0
        %1026 = vmatpush1.bf16.msra.mxu0 0
        %1027 = vmatprep.subr.bf16.mxu0 0
        %1028 = vmatpush1.bf16.msra.mxu0 0
        %1029 = vmatprep.subr.bf16.mxu0 0
        %1030 = vmatpush1.bf16.msra.mxu0 0
        %1031 = vmatprep.subr.bf16.mxu0 0
        %1032 = vmatpush1.bf16.msra.mxu0 0
        %1033 = vmatprep.subr.bf16.mxu0 0
        %1034 = vmatpush1.bf16.msra.mxu0 0
        %1035 = vmatprep.subr.bf16.mxu0 0
        %1036 = vmatpush1.bf16.msra.mxu0 0
        %1037 = vmatprep.subr.bf16.mxu0 0
        %1038 = vmatpush1.bf16.msra.mxu0 0
        %1039 = vmatprep.mubr.bf16.mxu0 0
        %1040 = vmatmul.mubr.bf16.gmra.mrb[0].mxu0 %v935
        %v1041 = vpop.f32.mrb[0].mxu0
        %v1042 = vadd.f32 %v957, %v1041
        %v1043 = vpop.f32.mrb[0].mxu0
        %v1044 = vpop.f32.mrb[0].mxu0
        %v1045 = vpop.f32.mrb[0].mxu0
        %1046 = vdwg.mxu0
        %v1047 = vtanh.pop %v1042
        %v1048 = vpack.c.bf16 %v1047, %v1047
        %v1049 = vld [vmem:[#allocation9] sm:$0xf]
        %v1050 = vld [vmem:[#allocation9 + $0x4] sm:$0xf]
        %v1051 = vld [vmem:[#allocation9 + $0x8] sm:$0xf]
        %v1052 = vld [vmem:[#allocation9 + $0xc] sm:$0xf]
        %v1053 = vld [vmem:[#allocation9 + $0x10] sm:$0xf]
        %v1054 = vld [vmem:[#allocation9 + $0x14] sm:$0xf]
        %v1055 = vld [vmem:[#allocation9 + $0x18] sm:$0xf]
        %v1056 = vld [vmem:[#allocation9 + $0x1c] sm:$0xf]
        %v1057 = vld [vmem:[#allocation9 + $0x20] sm:$0xf]
        %v1058 = vld [vmem:[#allocation9 + $0x24] sm:$0xf]
        %v1059 = vld [vmem:[#allocation9 + $0x28] sm:$0xf]
        %v1060 = vld [vmem:[#allocation9 + $0x2c] sm:$0xf]
        %v1061 = vld [vmem:[#allocation9 + $0x30] sm:$0xf]
        %v1062 = vld [vmem:[#allocation9 + $0x34] sm:$0xf]
        %v1063 = vld [vmem:[#allocation9 + $0x38] sm:$0xf]
        %v1064 = vld [vmem:[#allocation9 + $0x3c] sm:$0xf]
        %v1065 = vld [vmem:[#allocation10] sm:$0x1]
        %v1067 = vlaneseq
        %v1068 = vshrl.u32 %v1067, 7
        %v1069 = vsub.s32 0, %v1068
        %v1070 = vrot.slane %v1065, %v1069
        %v1088 = vunpack.c.l.b16 %v1049
        %v1089 = vunpack.c.l.b16 %v1050
        %v1090 = vunpack.c.l.b16 %v1051
        %v1091 = vunpack.c.l.b16 %v1052
        %v1092 = vunpack.c.l.b16 %v1053
        %v1093 = vunpack.c.l.b16 %v1054
        %v1094 = vunpack.c.l.b16 %v1055
        %v1095 = vunpack.c.l.b16 %v1056
        %v1096 = vunpack.c.l.b16 %v1057
        %v1097 = vunpack.c.l.b16 %v1058
        %v1098 = vunpack.c.l.b16 %v1059
        %v1099 = vunpack.c.l.b16 %v1060
        %v1100 = vunpack.c.l.b16 %v1061
        %v1101 = vunpack.c.l.b16 %v1062
        %v1102 = vunpack.c.l.b16 %v1063
        %v1103 = vunpack.c.l.b16 %v1064
        %v1104 = vpack.c.b16 %v1089, %v1088
        %v1105 = vpack.c.b16 %v1091, %v1090
        %v1106 = vpack.c.b16 %v1093, %v1092
        %v1107 = vpack.c.b16 %v1095, %v1094
        %v1108 = vpack.c.b16 %v1097, %v1096
        %v1109 = vpack.c.b16 %v1099, %v1098
        %v1110 = vpack.c.b16 %v1101, %v1100
        %v1111 = vpack.c.b16 %v1103, %v1102
        %1120 = vmatprep.subr.bf16.mxu0 0
        %1121 = vmatpush1.bf16.msra.mxu0 %v1104
        %1122 = vmatprep.subr.bf16.mxu0 0
        %1123 = vmatpush1.bf16.msra.mxu0 %v1105
        %1124 = vmatprep.subr.bf16.mxu0 0
        %1125 = vmatpush1.bf16.msra.mxu0 %v1106
        %1126 = vmatprep.subr.bf16.mxu0 0
        %1127 = vmatpush1.bf16.msra.mxu0 %v1107
        %1128 = vmatprep.subr.bf16.mxu0 0
        %1129 = vmatpush1.bf16.msra.mxu0 %v1108
        %1130 = vmatprep.subr.bf16.mxu0 0
        %1131 = vmatpush1.bf16.msra.mxu0 %v1109
        %1132 = vmatprep.subr.bf16.mxu0 0
        %1133 = vmatpush1.bf16.msra.mxu0 %v1110
        %1134 = vmatprep.subr.bf16.mxu0 0
        %1135 = vmatpush1.bf16.msra.mxu0 %v1111
        %1136 = vmatprep.subr.bf16.mxu0 0
        %1137 = vmatpush1.bf16.msra.mxu0 0
        %1138 = vmatprep.subr.bf16.mxu0 0
        %1139 = vmatpush1.bf16.msra.mxu0 0
        %1140 = vmatprep.subr.bf16.mxu0 0
        %1141 = vmatpush1.bf16.msra.mxu0 0
        %1142 = vmatprep.subr.bf16.mxu0 0
        %1143 = vmatpush1.bf16.msra.mxu0 0
        %1144 = vmatprep.subr.bf16.mxu0 0
        %1145 = vmatpush1.bf16.msra.mxu0 0
        %1146 = vmatprep.subr.bf16.mxu0 0
        %1147 = vmatpush1.bf16.msra.mxu0 0
        %1148 = vmatprep.subr.bf16.mxu0 0
        %1149 = vmatpush1.bf16.msra.mxu0 0
        %1150 = vmatprep.subr.bf16.mxu0 0
        %1151 = vmatpush1.bf16.msra.mxu0 0
        %1152 = vmatprep.mubr.bf16.mxu0 0
        %1153 = vmatmul.mubr.bf16.gmra.mrb[0].mxu0 %v1048
        %v1154 = vpop.f32.mrb[0].mxu0
        %v1155 = vadd.f32 %v1070, %v1154
        %v1156 = vpop.f32.mrb[0].mxu0
        %v1157 = vpop.f32.mrb[0].mxu0
        %v1158 = vpop.f32.mrb[0].mxu0
        %1159 = vdwg.mxu0
        %v1160 = vtanh.pop %v1155
        %v1161 = vpack.c.bf16 %v1160, %v1160
        %v1162 = vld [vmem:[#allocation12] sm:$0xf]
        %v1163 = vld [vmem:[#allocation12 + $0x4] sm:$0xf]
        %v1164 = vld [vmem:[#allocation12 + $0x8] sm:$0xf]
        %v1165 = vld [vmem:[#allocation12 + $0xc] sm:$0xf]
        %v1166 = vld [vmem:[#allocation12 + $0x10] sm:$0xf]
        %v1167 = vld [vmem:[#allocation12 + $0x14] sm:$0xf]
        %v1168 = vld [vmem:[#allocation12 + $0x18] sm:$0xf]
        %v1169 = vld [vmem:[#allocation12 + $0x1c] sm:$0xf]
        %v1170 = vld [vmem:[#allocation12 + $0x20] sm:$0xf]
        %v1171 = vld [vmem:[#allocation12 + $0x24] sm:$0xf]
        %v1172 = vld [vmem:[#allocation12 + $0x28] sm:$0xf]
        %v1173 = vld [vmem:[#allocation12 + $0x2c] sm:$0xf]
        %v1174 = vld [vmem:[#allocation12 + $0x30] sm:$0xf]
        %v1175 = vld [vmem:[#allocation12 + $0x34] sm:$0xf]
        %v1176 = vld [vmem:[#allocation12 + $0x38] sm:$0xf]
        %v1177 = vld [vmem:[#allocation12 + $0x3c] sm:$0xf]
        %v1178 = vld [vmem:[#allocation13] sm:$0x1]
        %v1180 = vlaneseq
        %v1181 = vshrl.u32 %v1180, 7
        %v1182 = vsub.s32 0, %v1181
        %v1183 = vrot.slane %v1178, %v1182
        %v1201 = vunpack.c.l.b16 %v1162
        %v1202 = vunpack.c.l.b16 %v1163
        %v1203 = vunpack.c.l.b16 %v1164
        %v1204 = vunpack.c.l.b16 %v1165
        %v1205 = vunpack.c.l.b16 %v1166
        %v1206 = vunpack.c.l.b16 %v1167
        %v1207 = vunpack.c.l.b16 %v1168
        %v1208 = vunpack.c.l.b16 %v1169
        %v1209 = vunpack.c.l.b16 %v1170
        %v1210 = vunpack.c.l.b16 %v1171
        %v1211 = vunpack.c.l.b16 %v1172
        %v1212 = vunpack.c.l.b16 %v1173
        %v1213 = vunpack.c.l.b16 %v1174
        %v1214 = vunpack.c.l.b16 %v1175
        %v1215 = vunpack.c.l.b16 %v1176
        %v1216 = vunpack.c.l.b16 %v1177
        %v1217 = vpack.c.b16 %v1202, %v1201
        %v1218 = vpack.c.b16 %v1204, %v1203
        %v1219 = vpack.c.b16 %v1206, %v1205
        %v1220 = vpack.c.b16 %v1208, %v1207
        %v1221 = vpack.c.b16 %v1210, %v1209
        %v1222 = vpack.c.b16 %v1212, %v1211
        %v1223 = vpack.c.b16 %v1214, %v1213
        %v1224 = vpack.c.b16 %v1216, %v1215
        %1233 = vmatprep.subr.bf16.mxu0 0
        %1234 = vmatpush1.bf16.msra.mxu0 %v1217
        %1235 = vmatprep.subr.bf16.mxu0 0
        %1236 = vmatpush1.bf16.msra.mxu0 %v1218
        %1237 = vmatprep.subr.bf16.mxu0 0
        %1238 = vmatpush1.bf16.msra.mxu0 %v1219
        %1239 = vmatprep.subr.bf16.mxu0 0
        %1240 = vmatpush1.bf16.msra.mxu0 %v1220
        %1241 = vmatprep.subr.bf16.mxu0 0
        %1242 = vmatpush1.bf16.msra.mxu0 %v1221
        %1243 = vmatprep.subr.bf16.mxu0 0
        %1244 = vmatpush1.bf16.msra.mxu0 %v1222
        %1245 = vmatprep.subr.bf16.mxu0 0
        %1246 = vmatpush1.bf16.msra.mxu0 %v1223
        %1247 = vmatprep.subr.bf16.mxu0 0
        %1248 = vmatpush1.bf16.msra.mxu0 %v1224
        %1249 = vmatprep.subr.bf16.mxu0 0
        %1250 = vmatpush1.bf16.msra.mxu0 0
        %1251 = vmatprep.subr.bf16.mxu0 0
        %1252 = vmatpush1.bf16.msra.mxu0 0
        %1253 = vmatprep.subr.bf16.mxu0 0
        %1254 = vmatpush1.bf16.msra.mxu0 0
        %1255 = vmatprep.subr.bf16.mxu0 0
        %1256 = vmatpush1.bf16.msra.mxu0 0
        %1257 = vmatprep.subr.bf16.mxu0 0
        %1258 = vmatpush1.bf16.msra.mxu0 0
        %1259 = vmatprep.subr.bf16.mxu0 0
        %1260 = vmatpush1.bf16.msra.mxu0 0
        %1261 = vmatprep.subr.bf16.mxu0 0
        %1262 = vmatpush1.bf16.msra.mxu0 0
        %1263 = vmatprep.subr.bf16.mxu0 0
        %1264 = vmatpush1.bf16.msra.mxu0 0
        %1265 = vmatprep.mubr.bf16.mxu0 0
        %1266 = vmatmul.mubr.bf16.gmra.mrb[0].mxu0 %v1161
        %v1267 = vpop.f32.mrb[0].mxu0
        %v1268 = vadd.f32 %v1183, %v1267
        %v1269 = vpop.f32.mrb[0].mxu0
        %v1270 = vpop.f32.mrb[0].mxu0
        %v1271 = vpop.f32.mrb[0].mxu0
        %1272 = vdwg.mxu0
        %v1273 = vtanh.pop %v1268
        %v1274 = vpack.c.bf16 %v1273, %v1273
        %v1275 = vld [vmem:[%s11] sm:$0xf]
        %v1276 = vld [vmem:[%s11 + $0x4] sm:$0xf]
        %v1277 = vld [vmem:[%s11 + $0x8] sm:$0xf]
        %v1278 = vld [vmem:[%s11 + $0xc] sm:$0xf]
        %v1279 = vld [vmem:[%s11 + $0x10] sm:$0xf]
        %v1280 = vld [vmem:[%s11 + $0x14] sm:$0xf]
        %v1281 = vld [vmem:[%s11 + $0x18] sm:$0xf]
        %v1282 = vld [vmem:[%s11 + $0x1c] sm:$0xf]
        %v1283 = vld [vmem:[%s11 + $0x20] sm:$0xf]
        %v1284 = vld [vmem:[%s11 + $0x24] sm:$0xf]
        %v1285 = vld [vmem:[%s11 + $0x28] sm:$0xf]
        %v1286 = vld [vmem:[%s11 + $0x2c] sm:$0xf]
        %v1287 = vld [vmem:[%s11 + $0x30] sm:$0xf]
        %v1288 = vld [vmem:[%s11 + $0x34] sm:$0xf]
        %v1289 = vld [vmem:[%s11 + $0x38] sm:$0xf]
        %v1290 = vld [vmem:[%s11 + $0x3c] sm:$0xf]
        %v1291 = vld [vmem:[#allocation15] sm:$0x1]
        %v1293 = vlaneseq
        %v1294 = vshrl.u32 %v1293, 7
        %v1295 = vsub.s32 0, %v1294
        %v1296 = vrot.slane %v1291, %v1295
        %v1314 = vunpack.c.l.b16 %v1275
        %v1315 = vunpack.c.l.b16 %v1276
        %v1316 = vunpack.c.l.b16 %v1277
        %v1317 = vunpack.c.l.b16 %v1278
        %v1318 = vunpack.c.l.b16 %v1279
        %v1319 = vunpack.c.l.b16 %v1280
        %v1320 = vunpack.c.l.b16 %v1281
        %v1321 = vunpack.c.l.b16 %v1282
        %v1322 = vunpack.c.l.b16 %v1283
        %v1323 = vunpack.c.l.b16 %v1284
        %v1324 = vunpack.c.l.b16 %v1285
        %v1325 = vunpack.c.l.b16 %v1286
        %v1326 = vunpack.c.l.b16 %v1287
        %v1327 = vunpack.c.l.b16 %v1288
        %v1328 = vunpack.c.l.b16 %v1289
        %v1329 = vunpack.c.l.b16 %v1290
        %v1330 = vpack.c.b16 %v1315, %v1314
        %v1331 = vpack.c.b16 %v1317, %v1316
        %v1332 = vpack.c.b16 %v1319, %v1318
        %v1333 = vpack.c.b16 %v1321, %v1320
        %v1334 = vpack.c.b16 %v1323, %v1322
        %v1335 = vpack.c.b16 %v1325, %v1324
        %v1336 = vpack.c.b16 %v1327, %v1326
        %v1337 = vpack.c.b16 %v1329, %v1328
        %1346 = vmatprep.subr.bf16.mxu0 0
        %1347 = vmatpush1.bf16.msra.mxu0 %v1330
        %1348 = vmatprep.subr.bf16.mxu0 0
        %1349 = vmatpush1.bf16.msra.mxu0 %v1331
        %1350 = vmatprep.subr.bf16.mxu0 0
        %1351 = vmatpush1.bf16.msra.mxu0 %v1332
        %1352 = vmatprep.subr.bf16.mxu0 0
        %1353 = vmatpush1.bf16.msra.mxu0 %v1333
        %1354 = vmatprep.subr.bf16.mxu0 0
        %1355 = vmatpush1.bf16.msra.mxu0 %v1334
        %1356 = vmatprep.subr.bf16.mxu0 0
        %1357 = vmatpush1.bf16.msra.mxu0 %v1335
        %1358 = vmatprep.subr.bf16.mxu0 0
        %1359 = vmatpush1.bf16.msra.mxu0 %v1336
        %1360 = vmatprep.subr.bf16.mxu0 0
        %1361 = vmatpush1.bf16.msra.mxu0 %v1337
        %1362 = vmatprep.subr.bf16.mxu0 0
        %1363 = vmatpush1.bf16.msra.mxu0 0
        %1364 = vmatprep.subr.bf16.mxu0 0
        %1365 = vmatpush1.bf16.msra.mxu0 0
        %1366 = vmatprep.subr.bf16.mxu0 0
        %1367 = vmatpush1.bf16.msra.mxu0 0
        %1368 = vmatprep.subr.bf16.mxu0 0
        %1369 = vmatpush1.bf16.msra.mxu0 0
        %1370 = vmatprep.subr.bf16.mxu0 0
        %1371 = vmatpush1.bf16.msra.mxu0 0
        %1372 = vmatprep.subr.bf16.mxu0 0
        %1373 = vmatpush1.bf16.msra.mxu0 0
        %1374 = vmatprep.subr.bf16.mxu0 0
        %1375 = vmatpush1.bf16.msra.mxu0 0
        %1376 = vmatprep.subr.bf16.mxu0 0
        %1377 = vmatpush1.bf16.msra.mxu0 0
        %1378 = vmatprep.mubr.bf16.mxu0 0
        %1379 = vmatmul.mubr.bf16.gmra.mrb[0].mxu0 %v1274
        %v1380 = vpop.f32.mrb[0].mxu0
        %v1381 = vadd.f32 %v1296, %v1380
        %v1382 = vpop.f32.mrb[0].mxu0
        %v1383 = vpop.f32.mrb[0].mxu0
        %v1384 = vpop.f32.mrb[0].mxu0
        %1385 = vdwg.mxu0
        %v1386 = vtanh.pop %v1381
        %v1387 = vpack.c.bf16 %v1386, %v1386
        %v1388 = vld [vmem:[#allocation16] sm:$0xff]
        %v1389 = vld [vmem:[#allocation16 + $0x8] sm:$0xff]
        %v1390 = vld [vmem:[#allocation16 + $0x10] sm:$0xff]
        %v1391 = vld [vmem:[#allocation16 + $0x18] sm:$0xff]
        %v1392 = vld [vmem:[#allocation16 + $0x20] sm:$0xff]
        %v1393 = vld [vmem:[#allocation16 + $0x28] sm:$0xff]
        %v1394 = vld [vmem:[#allocation16 + $0x30] sm:$0xff]
        %v1395 = vld [vmem:[#allocation16 + $0x38] sm:$0xff]
        %v1396 = vld [vmem:[#allocation16 + $0x40] sm:$0xff]
        %v1397 = vld [vmem:[#allocation16 + $0x48] sm:$0xff]
        %v1398 = vld [vmem:[#allocation16 + $0x50] sm:$0xff]
        %v1399 = vld [vmem:[#allocation16 + $0x58] sm:$0xff]
        %v1400 = vld [vmem:[#allocation16 + $0x60] sm:$0xff]
        %v1401 = vld [vmem:[#allocation16 + $0x68] sm:$0xff]
        %v1402 = vld [vmem:[#allocation16 + $0x70] sm:$0xff]
        %v1403 = vld [vmem:[#allocation16 + $0x78] sm:$0xff]
        %v1404 = vld [vmem:[%s14] sm:$0x3]
        %v1406 = vlaneseq
        %v1407 = vshrl.u32 %v1406, 7
        %v1408 = vsub.s32 0, %v1407
        %v1409 = vrot.slane %v1404, %v1408
        %v1410 = vlaneseq
        %v1411 = vshrl.u32 %v1410, 7
        %v1412 = vsub.s32 1, %v1411
        %v1413 = vrot.slane %v1404, %v1412
        %v1432 = vunpack.c.l.b16 %v1388
        %v1433 = vunpack.c.h.b16 %v1388
        %v1434 = vunpack.c.l.b16 %v1389
        %v1435 = vunpack.c.h.b16 %v1389
        %v1436 = vunpack.c.l.b16 %v1390
        %v1437 = vunpack.c.h.b16 %v1390
        %v1438 = vunpack.c.l.b16 %v1391
        %v1439 = vunpack.c.h.b16 %v1391
        %v1440 = vunpack.c.l.b16 %v1392
        %v1441 = vunpack.c.h.b16 %v1392
        %v1442 = vunpack.c.l.b16 %v1393
        %v1443 = vunpack.c.h.b16 %v1393
        %v1444 = vunpack.c.l.b16 %v1394
        %v1445 = vunpack.c.h.b16 %v1394
        %v1446 = vunpack.c.l.b16 %v1395
        %v1447 = vunpack.c.h.b16 %v1395
        %v1448 = vunpack.c.l.b16 %v1396
        %v1449 = vunpack.c.h.b16 %v1396
        %v1450 = vunpack.c.l.b16 %v1397
        %v1451 = vunpack.c.h.b16 %v1397
        %v1452 = vunpack.c.l.b16 %v1398
        %v1453 = vunpack.c.h.b16 %v1398
        %v1454 = vunpack.c.l.b16 %v1399
        %v1455 = vunpack.c.h.b16 %v1399
        %v1456 = vunpack.c.l.b16 %v1400
        %v1457 = vunpack.c.h.b16 %v1400
        %v1458 = vunpack.c.l.b16 %v1401
        %v1459 = vunpack.c.h.b16 %v1401
        %v1460 = vunpack.c.l.b16 %v1402
        %v1461 = vunpack.c.h.b16 %v1402
        %v1462 = vunpack.c.l.b16 %v1403
        %v1463 = vunpack.c.h.b16 %v1403
        %v1464 = vpack.c.b16 %v1434, %v1432
        %v1465 = vpack.c.b16 %v1435, %v1433
        %v1466 = vpack.c.b16 %v1438, %v1436
        %v1467 = vpack.c.b16 %v1439, %v1437
        %v1468 = vpack.c.b16 %v1442, %v1440
        %v1469 = vpack.c.b16 %v1443, %v1441
        %v1470 = vpack.c.b16 %v1446, %v1444
        %v1471 = vpack.c.b16 %v1447, %v1445
        %v1472 = vpack.c.b16 %v1450, %v1448
        %v1473 = vpack.c.b16 %v1451, %v1449
        %v1474 = vpack.c.b16 %v1454, %v1452
        %v1475 = vpack.c.b16 %v1455, %v1453
        %v1476 = vpack.c.b16 %v1458, %v1456
        %v1477 = vpack.c.b16 %v1459, %v1457
        %v1478 = vpack.c.b16 %v1462, %v1460
        %v1479 = vpack.c.b16 %v1463, %v1461
        %1496 = vmatprep.subr.bf16.mxu0 %v1465
        %1497 = vmatpush1.bf16.msra.mxu0 %v1464
        %1498 = vmatprep.subr.bf16.mxu0 %v1467
        %1499 = vmatpush1.bf16.msra.mxu0 %v1466
        %1500 = vmatprep.subr.bf16.mxu0 %v1469
        %1501 = vmatpush1.bf16.msra.mxu0 %v1468
        %1502 = vmatprep.subr.bf16.mxu0 %v1471
        %1503 = vmatpush1.bf16.msra.mxu0 %v1470
        %1504 = vmatprep.subr.bf16.mxu0 %v1473
        %1505 = vmatpush1.bf16.msra.mxu0 %v1472
        %1506 = vmatprep.subr.bf16.mxu0 %v1475
        %1507 = vmatpush1.bf16.msra.mxu0 %v1474
        %1508 = vmatprep.subr.bf16.mxu0 %v1477
        %1509 = vmatpush1.bf16.msra.mxu0 %v1476
        %1510 = vmatprep.subr.bf16.mxu0 %v1479
        %1511 = vmatpush1.bf16.msra.mxu0 %v1478
        %1512 = vmatprep.subr.bf16.mxu0 0
        %1513 = vmatpush1.bf16.msra.mxu0 0
        %1514 = vmatprep.subr.bf16.mxu0 0
        %1515 = vmatpush1.bf16.msra.mxu0 0
        %1516 = vmatprep.subr.bf16.mxu0 0
        %1517 = vmatpush1.bf16.msra.mxu0 0
        %1518 = vmatprep.subr.bf16.mxu0 0
        %1519 = vmatpush1.bf16.msra.mxu0 0
        %1520 = vmatprep.subr.bf16.mxu0 0
        %1521 = vmatpush1.bf16.msra.mxu0 0
        %1522 = vmatprep.subr.bf16.mxu0 0
        %1523 = vmatpush1.bf16.msra.mxu0 0
        %1524 = vmatprep.subr.bf16.mxu0 0
        %1525 = vmatpush1.bf16.msra.mxu0 0
        %1526 = vmatprep.subr.bf16.mxu0 0
        %1527 = vmatpush1.bf16.msra.mxu0 0
        %1528 = vmatprep.mubr.bf16.mxu0 0
        %1529 = vmatmul.mubr.bf16.gmra.mrb[0].mxu0 %v1387
        %v1530 = vpop.f32.mrb[0].mxu0
        %v1531 = vadd.f32 %v1409, %v1530
        %v1532 = vpop.f32.mrb[0].mxu0
        %v1533 = vadd.f32 %v1413, %v1532
        %v1534 = vpop.f32.mrb[0].mxu0
        %v1535 = vpop.f32.mrb[0].mxu0
        %1536 = vdwg.mxu0
        %v1537 = vtanh.pop %v1531
        %v1538 = vtanh.pop %v1533
        %v1539 = vpack.c.bf16 %v1537, %v1537
        %v1540 = vpack.c.bf16 %v1538, %v1538
        %v1541 = vld [vmem:[%s15] sm:$0xf]
        %v1542 = vld [vmem:[%s15 + $0x4] sm:$0xf]
        %v1543 = vld [vmem:[%s15 + $0x8] sm:$0xf]
        %v1544 = vld [vmem:[%s15 + $0xc] sm:$0xf]
        %v1545 = vld [vmem:[%s15 + $0x10] sm:$0xf]
        %v1546 = vld [vmem:[%s15 + $0x14] sm:$0xf]
        %v1547 = vld [vmem:[%s15 + $0x18] sm:$0xf]
        %v1548 = vld [vmem:[%s15 + $0x1c] sm:$0xf]
        %v1549 = vld [vmem:[%s15 + $0x20] sm:$0xf]
        %v1550 = vld [vmem:[%s15 + $0x24] sm:$0xf]
        %v1551 = vld [vmem:[%s15 + $0x28] sm:$0xf]
        %v1552 = vld [vmem:[%s15 + $0x2c] sm:$0xf]
        %v1553 = vld [vmem:[%s15 + $0x30] sm:$0xf]
        %v1554 = vld [vmem:[%s15 + $0x34] sm:$0xf]
        %v1555 = vld [vmem:[%s15 + $0x38] sm:$0xf]
        %v1556 = vld [vmem:[%s15 + $0x3c] sm:$0xf]
        %v1557 = vld [vmem:[%s15 + $0x40] sm:$0xf]
        %v1558 = vld [vmem:[%s15 + $0x44] sm:$0xf]
        %v1559 = vld [vmem:[%s15 + $0x48] sm:$0xf]
        %v1560 = vld [vmem:[%s15 + $0x4c] sm:$0xf]
        %v1561 = vld [vmem:[%s15 + $0x50] sm:$0xf]
        %v1562 = vld [vmem:[%s15 + $0x54] sm:$0xf]
        %v1563 = vld [vmem:[%s15 + $0x58] sm:$0xf]
        %v1564 = vld [vmem:[%s15 + $0x5c] sm:$0xf]
        %v1565 = vld [vmem:[%s15 + $0x60] sm:$0xf]
        %v1566 = vld [vmem:[%s15 + $0x64] sm:$0xf]
        %v1567 = vld [vmem:[%s15 + $0x68] sm:$0xf]
        %v1568 = vld [vmem:[%s15 + $0x6c] sm:$0xf]
        %v1569 = vld [vmem:[%s15 + $0x70] sm:$0xf]
        %v1570 = vld [vmem:[%s15 + $0x74] sm:$0xf]
        %v1571 = vld [vmem:[%s15 + $0x78] sm:$0xf]
        %v1572 = vld [vmem:[%s15 + $0x7c] sm:$0xf]
        %v1573 = vld [vmem:[%s16] sm:$0x1]
        %v1575 = vlaneseq
        %v1576 = vshrl.u32 %v1575, 7
        %v1577 = vsub.s32 0, %v1576
        %v1578 = vrot.slane %v1573, %v1577
        %v1612 = vunpack.c.l.b16 %v1541
        %v1613 = vunpack.c.l.b16 %v1542
        %v1614 = vunpack.c.l.b16 %v1543
        %v1615 = vunpack.c.l.b16 %v1544
        %v1616 = vunpack.c.l.b16 %v1545
        %v1617 = vunpack.c.l.b16 %v1546
        %v1618 = vunpack.c.l.b16 %v1547
        %v1619 = vunpack.c.l.b16 %v1548
        %v1620 = vunpack.c.l.b16 %v1549
        %v1621 = vunpack.c.l.b16 %v1550
        %v1622 = vunpack.c.l.b16 %v1551
        %v1623 = vunpack.c.l.b16 %v1552
        %v1624 = vunpack.c.l.b16 %v1553
        %v1625 = vunpack.c.l.b16 %v1554
        %v1626 = vunpack.c.l.b16 %v1555
        %v1627 = vunpack.c.l.b16 %v1556
        %v1628 = vunpack.c.l.b16 %v1557
        %v1629 = vunpack.c.l.b16 %v1558
        %v1630 = vunpack.c.l.b16 %v1559
        %v1631 = vunpack.c.l.b16 %v1560
        %v1632 = vunpack.c.l.b16 %v1561
        %v1633 = vunpack.c.l.b16 %v1562
        %v1634 = vunpack.c.l.b16 %v1563
        %v1635 = vunpack.c.l.b16 %v1564
        %v1636 = vunpack.c.l.b16 %v1565
        %v1637 = vunpack.c.l.b16 %v1566
        %v1638 = vunpack.c.l.b16 %v1567
        %v1639 = vunpack.c.l.b16 %v1568
        %v1640 = vunpack.c.l.b16 %v1569
        %v1641 = vunpack.c.l.b16 %v1570
        %v1642 = vunpack.c.l.b16 %v1571
        %v1643 = vunpack.c.l.b16 %v1572
        %v1644 = vpack.c.b16 %v1613, %v1612
        %v1645 = vpack.c.b16 %v1615, %v1614
        %v1646 = vpack.c.b16 %v1617, %v1616
        %v1647 = vpack.c.b16 %v1619, %v1618
        %v1648 = vpack.c.b16 %v1621, %v1620
        %v1649 = vpack.c.b16 %v1623, %v1622
        %v1650 = vpack.c.b16 %v1625, %v1624
        %v1651 = vpack.c.b16 %v1627, %v1626
        %v1652 = vpack.c.b16 %v1629, %v1628
        %v1653 = vpack.c.b16 %v1631, %v1630
        %v1654 = vpack.c.b16 %v1633, %v1632
        %v1655 = vpack.c.b16 %v1635, %v1634
        %v1656 = vpack.c.b16 %v1637, %v1636
        %v1657 = vpack.c.b16 %v1639, %v1638
        %v1658 = vpack.c.b16 %v1641, %v1640
        %v1659 = vpack.c.b16 %v1643, %v1642
        %1676 = vmatprep.subr.bf16.mxu0 0
        %1677 = vmatpush1.bf16.msra.mxu0 %v1644
        %1678 = vmatprep.subr.bf16.mxu0 0
        %1679 = vmatpush1.bf16.msra.mxu0 %v1645
        %1680 = vmatprep.subr.bf16.mxu0 0
        %1681 = vmatpush1.bf16.msra.mxu0 %v1646
        %1682 = vmatprep.subr.bf16.mxu0 0
        %1683 = vmatpush1.bf16.msra.mxu0 %v1647
        %1684 = vmatprep.subr.bf16.mxu0 0
        %1685 = vmatpush1.bf16.msra.mxu0 %v1648
        %1686 = vmatprep.subr.bf16.mxu0 0
        %1687 = vmatpush1.bf16.msra.mxu0 %v1649
        %1688 = vmatprep.subr.bf16.mxu0 0
        %1689 = vmatpush1.bf16.msra.mxu0 %v1650
        %1690 = vmatprep.subr.bf16.mxu0 0
        %1691 = vmatpush1.bf16.msra.mxu0 %v1651
        %1692 = vmatprep.subr.bf16.mxu0 0
        %1693 = vmatpush1.bf16.msra.mxu0 %v1652
        %1694 = vmatprep.subr.bf16.mxu0 0
        %1695 = vmatpush1.bf16.msra.mxu0 %v1653
        %1696 = vmatprep.subr.bf16.mxu0 0
        %1697 = vmatpush1.bf16.msra.mxu0 %v1654
        %1698 = vmatprep.subr.bf16.mxu0 0
        %1699 = vmatpush1.bf16.msra.mxu0 %v1655
        %1700 = vmatprep.subr.bf16.mxu0 0
        %1701 = vmatpush1.bf16.msra.mxu0 %v1656
        %1702 = vmatprep.subr.bf16.mxu0 0
        %1703 = vmatpush1.bf16.msra.mxu0 %v1657
        %1704 = vmatprep.subr.bf16.mxu0 0
        %1705 = vmatpush1.bf16.msra.mxu0 %v1658
        %1706 = vmatprep.subr.bf16.mxu0 0
        %1707 = vmatpush1.bf16.msra.mxu0 %v1659
        %1708 = vmatprep.mubr.bf16.mxu0 %v1540
        %1709 = vmatmul.mubr.bf16.gmra.mrb[0].mxu0 %v1539
        %v1710 = vpop.f32.mrb[0].mxu0
        %v1711 = vadd.f32 %v1578, %v1710
        %v1712 = vpop.f32.mrb[0].mxu0
        %v1713 = vpop.f32.mrb[0].mxu0
        %v1714 = vpop.f32.mrb[0].mxu0
        %1715 = vdwg.mxu0
        %1716 = vst.msk [vmem:[%s677] sm:$0xff] %vm703, %v1711
        %p1717 = scmp.lt.s32.totalorder %s34, 1
        %s1718 = scalar_select %p1717, %s34, 1
        %s1719 = smul.addr %s1718, 8
        %s1720 = scalar_lea.vmem %s17, %s1719
        // Predicated region
        $region129: #{tpu_custom_call.1} parent=87 // pred_check
          %p1721 = pneg %p414
        $region130: #{tpu_custom_call.1} parent=87 // pred_check_branch
          %1723 = sbr.rel (%p1721) target = $region132
        $region131: #{tpu_custom_call.1} parent=87 // pred_region
          _
        $region132: #{tpu_custom_call.1} parent=87 // pred_fallthru
          _
      $region88: #{tpu_custom_call.1} parent=5 // pred_fallthru
        _
      %p1724 = scmp.le.s32.totalorder 2, %s29
      // Predicated region
      $region133: #{tpu_custom_call.1} parent=5 // pred_check
        %p1725 = pneg %p1724
      $region134: #{tpu_custom_call.1} parent=5 // pred_check_branch
        %1727 = sbr.rel (%p1725) target = $region136
      $region135: #{tpu_custom_call.1} parent=5 // pred_region
        %s1728 = ssub.s32 %s29, 2
        // Predicated region
        $region137: #{tpu_custom_call.1} parent=135 // pred_check
          %p1729 = pneg %p420
        $region138: #{tpu_custom_call.1} parent=135 // pred_check_branch
          %1731 = sbr.rel (%p1729) target = $region140
        $region139: #{tpu_custom_call.1} parent=135 // pred_region
          %p1732 = scmp.lt.s32.totalorder %s35, 1
          %s1733 = scalar_select %p1732, %s35, 1
          %s1734 = smul.addr %s1733, 8
          %s1735 = scalar_lea.vmem %s17, %s1734
        $region140: #{tpu_custom_call.1} parent=135 // pred_fallthru
          _
      $region136: #{tpu_custom_call.1} parent=5 // pred_fallthru
        _
    $region6: #{tpu_custom_call.1} parent=1 // loop_footer
      %s33 = sadd.s32 1, %s29
    $region7: #{tpu_custom_call.1} parent=1 // loop_footer_branch
      %28 = sbr.rel target = $region3
    $region8: #{tpu_custom_call.1} parent=1 // loop_exit
      _
    %1736 = vsyncpa [#allocation3], 1
    %s1737 = scalar_lea.sflag [#allocation3], 1
    %1738 = vsyncpa %s1737, 1
    %1739 = vsyncpa [#allocation5], 1
    %1740 = vsyncpa [#allocation8], 1
    %1741 = vsyncpa [#allocation11], 1
    %1742 = vsyncpa [#allocation14], 1
    %1743 = vsyncpa [#allocation17], 1

</llo_original>
